<compile_context>
chip_gen: v5e
topology: v5e:2x2
jax: 0.10.0
libtpu: 0.0.40
codegen_flags: <defaults>
</compile_context>

<pallas_src>
import functools

import numpy as np

import jax
import jax.numpy as jnp
from jax.experimental import pallas as pl
from jax.experimental.pallas import tpu as pltpu


def _svdpp_fused_kernel(f_ref, y_ref, u_ref, vt_ref, out_ref, w_ref):
    # f_ref  : (tm, Np)  int8  full (padded) item axis for this user-row tile
    # y_ref  : (Np, d)   f32   resident latent item matrix (fetched once)
    # u_ref  : (tm, d)   f32   user-factor row tile
    # vt_ref : (d, tn)   f32   lane-dense column tile of V.T
    # out_ref: (tm, tn)  out dtype
    # w_ref  : (tm, d)   f32   scratch; persists across the j axis for fixed i
    @pl.when(pl.program_id(1) == 0)
    def _():
        # W = U + F @ Y.  int8 -> f32 widening is a free VPU cast (the kernel
        # has huge VALU slack at ~2*d flops/byte).
        w_ref[...] = u_ref[...] + jnp.dot(
            f_ref[...].astype(jnp.float32), y_ref[...],
            preferred_element_type=jnp.float32)

    out_ref[...] = jnp.dot(
        w_ref[...], vt_ref[...],
        preferred_element_type=jnp.float32).astype(out_ref.dtype)


def _round_up(x, m):
    return (x + m - 1) // m * m


@functools.partial(jax.jit, static_argnames=("tm", "tn", "out_dtype"))
def svdpp_forward(implicit_train_matrix, user_w, item_w, latent_w,
                  *, tm=256, tn=2048, out_dtype=jnp.float32):
    """out = user_w @ item_w.T + (implicit @ latent_w) @ item_w.T."""
    num_users, num_items = implicit_train_matrix.shape
    d = user_w.shape[1]

    # Tile sizes: grow tn first (j axis is sequential anyway); keep the
    # parallel i axis with >= 2 blocks when possible (v7x: 2 TCs/chip).
    tm = min(tm, _round_up(num_users, 32))     # int8 sublane tile is 32
    tn = min(tn, _round_up(num_items, 128))
    Mp = _round_up(num_users, tm)
    Np = _round_up(num_items, tn)

    # F is a 0/1 indicator matrix in SVD++ -> exact in int8; halves the
    # dominant HBM read.  Callers with real-valued "implicit" data should pass
    # bf16/f32 and skip this cast.
    # TODO(synk): for huge num_items where a (tm, Np) int8 slab of F no longer
    # fits VMEM, stream F in chunks (pltpu.emit_pipeline) inside the j==0
    # branch instead of loading the full row slab.
    f_i8 = implicit_train_matrix.astype(jnp.int8)
    u = user_w.astype(jnp.float32)
    v = item_w.astype(jnp.float32)
    y = latent_w.astype(jnp.float32)

    if Mp != num_users or Np != num_items:
        f_i8 = jnp.pad(f_i8, ((0, Mp - num_users), (0, Np - num_items)))
        u = jnp.pad(u, ((0, Mp - num_users), (0, 0)))
        v = jnp.pad(v, ((0, Np - num_items), (0, 0)))
        y = jnp.pad(y, ((0, Np - num_items), (0, 0)))

    vt = v.T                                   # (d, Np) lane-dense RHS

    out_itemsize = np.dtype(out_dtype).itemsize
    vmem_bytes = (
        2 * (tm * Np                           # F slab (int8), double-buffered
             + Np * d * 4                      # Y (resident, still 2 buffers)
             + tm * d * 4                      # U row tile
             + d * tn * 4                      # V.T column tile
             + tm * tn * out_itemsize)         # output tile
        + tm * d * 4)                          # W scratch
    # v5e scoped-VMEM default is only 16 MiB -> raise it explicitly; cap at
    # 64 MiB so v7x (64 MiB physical VMEM) stays safe.
    vmem_limit = int(min(max(vmem_bytes + (2 << 20), 16 << 20), 64 << 20))

    out = pl.pallas_call(
        _svdpp_fused_kernel,
        out_shape=jax.ShapeDtypeStruct((Mp, Np), out_dtype),
        grid_spec=pltpu.PrefetchScalarGridSpec(
            num_scalar_prefetch=0,
            grid=(Mp // tm, Np // tn),
            in_specs=[
                pl.BlockSpec((tm, Np), lambda i, j: (i, 0)),   # F row slab
                pl.BlockSpec((Np, d), lambda i, j: (0, 0)),    # Y (resident)
                pl.BlockSpec((tm, d), lambda i, j: (i, 0)),    # U row tile
                pl.BlockSpec((d, tn), lambda i, j: (0, j)),    # V.T col tile
            ],
            out_specs=pl.BlockSpec((tm, tn), lambda i, j: (i, j)),
            scratch_shapes=[pltpu.VMEM((tm, d), jnp.float32)],
        ),
        compiler_params=pltpu.CompilerParams(
            dimension_semantics=("parallel", "arbitrary"),
            vmem_limit_bytes=vmem_limit),
        cost_estimate=pl.CostEstimate(
            flops=4 * Mp * Np * d,
            transcendentals=0,
            bytes_accessed=(Mp * Np                      # F (int8)
                            + Np * d * 4                 # Y
                            + Mp * d * 4                 # U
                            + Np * d * 4                 # V.T
                            + Mp * Np * out_itemsize)),  # out
    )(f_i8, y, u, vt)

    if Mp != num_users or Np != num_items:
        out = out[:num_users, :num_items]
    return out


def init_params(key, num_users, num_items, n_features):
    """Deterministic init matching the PyTorch __init__ semantics."""
    d = n_features + 2
    k1, k2, k3 = jax.random.split(key, 3)
    user_w = 0.01 * jax.random.normal(k1, (num_users, d), jnp.float32)
    item_w = 0.01 * jax.random.normal(k2, (num_items, d), jnp.float32)
    latent_w = 0.01 * jax.random.normal(k3, (num_items, d), jnp.float32)
    # user_factors[:, -1] = 1 ; item_factors[:, -2] = 1
    user_w = user_w.at[:, -1].set(1.0)
    item_w = item_w.at[:, -2].set(1.0)
    # latent_item_matrix[:, -1] = 0 ; [:, -2] = 0
    latent_w = latent_w.at[:, -1].set(0.0)
    latent_w = latent_w.at[:, -2].set(0.0)
    return user_w, item_w, latent_w


def _reference(implicit, user_w, item_w, latent_w):
    f_np = np.asarray(implicit, dtype=np.float32)
    u_np = np.asarray(user_w, dtype=np.float32)
    v_np = np.asarray(item_w, dtype=np.float32)
    y_np = np.asarray(latent_w, dtype=np.float32)
    return u_np @ v_np.T + (f_np @ y_np) @ v_np.T


if __name__ == "__main__":
    num_users, num_items, n_features = 256, 512, 30   # d = 32
    key = jax.random.PRNGKey(0)
    kp, kf = jax.random.split(key)

    user_w, item_w, latent_w = init_params(kp, num_users, num_items, n_features)
    # 0/1 implicit-feedback indicator, stored as int8 (exact; halves HBM read).
    implicit = (jax.random.uniform(kf, (num_users, num_items)) < 0.1
                ).astype(jnp.int8)

    out = svdpp_forward(implicit, user_w, item_w, latent_w)
    out = jax.block_until_ready(out)
    assert out.shape == (num_users, num_items)
    assert out.dtype == jnp.float32

    ref = _reference(implicit, user_w, item_w, latent_w)
    err = float(np.max(np.abs(np.asarray(out) - ref)))
    assert err < 2e-3, err

    # Ragged-shape path (exercises the zero-padding the review asked for).
    nu2, ni2 = 200, 300
    uw2, iw2, lw2 = init_params(kp, nu2, ni2, n_features)
    imp2 = (jax.random.uniform(kf, (nu2, ni2)) < 0.1).astype(jnp.int8)
    out2 = jax.block_until_ready(svdpp_forward(imp2, uw2, iw2, lw2))
    assert out2.shape == (nu2, ni2)
    ref2 = _reference(imp2, uw2, iw2, lw2)
    err2 = float(np.max(np.abs(np.asarray(out2) - ref2)))
    assert err2 < 2e-3, err2

    print("KERNEL_OK")
</pallas_src>

<mosaic_0001>
module attributes {stable_mosaic.version = 11 : i64} {
  func.func @_svdpp_fused_kernel(%arg0: i32, %arg1: i32, %arg2: memref<256x512xi8, #tpu.memory_space<vmem>>, %arg3: memref<512x32xf32, #tpu.memory_space<vmem>>, %arg4: memref<256x32xf32, #tpu.memory_space<vmem>>, %arg5: memref<32x512xf32, #tpu.memory_space<vmem>>, %arg6: memref<256x512xf32, #tpu.memory_space<vmem>>, %arg7: memref<256x32xf32, #tpu.memory_space<vmem>>) attributes {dimension_semantics = [#tpu.dimension_semantics<parallel>, #tpu.dimension_semantics<arbitrary>], iteration_bounds = array<i64: 1, 1>, scalar_prefetch = 0 : i64, scratch_operands = 1 : i64, tpu.core_type = #tpu.core_type<tc>, window_params = [{transform_indices = @transform_0, window_bounds = array<i64: 256, 512>}, {pipeline_mode = #tpu.pipeline_mode<synchronous>, transform_indices = @transform_1, window_bounds = array<i64: 512, 32>}, {transform_indices = @transform_2, window_bounds = array<i64: 256, 32>}, {transform_indices = @transform_3, window_bounds = array<i64: 32, 512>}, {transform_indices = @transform_4, window_bounds = array<i64: 256, 512>}]} {
    %c0_i32 = arith.constant 0 : i32
    %0 = arith.cmpi eq, %arg1, %c0_i32 : i32
    %1 = arith.extui %0 : i1 to i32
    %c0_i32_0 = arith.constant 0 : i32
    %2 = arith.cmpi ne, %1, %c0_i32_0 : i32
    scf.if %2 {
      %c0_6 = arith.constant 0 : index
      %c0_7 = arith.constant 0 : index
      %7 = vector.load %arg4[%c0_6, %c0_7] : memref<256x32xf32, #tpu.memory_space<vmem>>, vector<256x32xf32>
      %c0_8 = arith.constant 0 : index
      %c0_9 = arith.constant 0 : index
      %8 = vector.load %arg2[%c0_8, %c0_9] : memref<256x512xi8, #tpu.memory_space<vmem>>, vector<256x512xi8>
      %9 = arith.sitofp %8 : vector<256x512xi8> to vector<256x512xf32>
      %c0_10 = arith.constant 0 : index
      %c0_11 = arith.constant 0 : index
      %10 = vector.load %arg3[%c0_10, %c0_11] : memref<512x32xf32, #tpu.memory_space<vmem>>, vector<512x32xf32>
      %cst_12 = arith.constant dense<0.000000e+00> : vector<256x32xf32>
      %11 = tpu.matmul %9, %10, %cst_12 {dimension_numbers = #tpu.dot_dimension_numbers<[1], [0], [0], [1], [0, 0, 1, 1], [], []>} : vector<256x512xf32>, vector<512x32xf32>, vector<256x32xf32> -> vector<256x32xf32>
      %12 = arith.addf %7, %11 : vector<256x32xf32>
      %c0_13 = arith.constant 0 : index
      %c0_14 = arith.constant 0 : index
      %13 = vector.load %arg7[%c0_13, %c0_14] : memref<256x32xf32, #tpu.memory_space<vmem>>, vector<256x32xf32>
      tpu.vector_store %arg7[%c0_13, %c0_14], %12 {strides = array<i32>} : memref<256x32xf32, #tpu.memory_space<vmem>>, vector<256x32xf32>,
    } else {
    }
    %c0 = arith.constant 0 : index
    %c0_1 = arith.constant 0 : index
    %3 = vector.load %arg7[%c0, %c0_1] : memref<256x32xf32, #tpu.memory_space<vmem>>, vector<256x32xf32>
    %c0_2 = arith.constant 0 : index
    %c0_3 = arith.constant 0 : index
    %4 = vector.load %arg5[%c0_2, %c0_3] : memref<32x512xf32, #tpu.memory_space<vmem>>, vector<32x512xf32>
    %cst = arith.constant dense<0.000000e+00> : vector<256x512xf32>
    %5 = tpu.matmul %3, %4, %cst {dimension_numbers = #tpu.dot_dimension_numbers<[1], [0], [0], [1], [0, 0, 1, 1], [], []>} : vector<256x32xf32>, vector<32x512xf32>, vector<256x512xf32> -> vector<256x512xf32>
    %c0_4 = arith.constant 0 : index
    %c0_5 = arith.constant 0 : index
    %6 = vector.load %arg6[%c0_4, %c0_5] : memref<256x512xf32, #tpu.memory_space<vmem>>, vector<256x512xf32>
    tpu.vector_store %arg6[%c0_4, %c0_5], %5 {strides = array<i32>} : memref<256x512xf32, #tpu.memory_space<vmem>>, vector<256x512xf32>,
    return
  }
  func.func @transform_0(%arg0: i32, %arg1: i32) -> (i32, i32) {
    %c0_i32 = arith.constant 0 : i32
    %c0_i32_0 = arith.constant 0 : i32
    return %arg0, %c0_i32 : i32, i32
  }
  func.func @transform_1(%arg0: i32, %arg1: i32) -> (i32, i32) {
    %c0_i32 = arith.constant 0 : i32
    %c0_i32_0 = arith.constant 0 : i32
    %c0_i32_1 = arith.constant 0 : i32
    return %c0_i32, %c0_i32_0 : i32, i32
  }
  func.func @transform_2(%arg0: i32, %arg1: i32) -> (i32, i32) {
    %c0_i32 = arith.constant 0 : i32
    %c0_i32_0 = arith.constant 0 : i32
    return %arg0, %c0_i32 : i32, i32
  }
  func.func @transform_3(%arg0: i32, %arg1: i32) -> (i32, i32) {
    %c0_i32 = arith.constant 0 : i32
    %c0_i32_0 = arith.constant 0 : i32
    return %c0_i32, %arg1 : i32, i32
  }
  func.func @transform_4(%arg0: i32, %arg1: i32) -> (i32, i32) {
    %c0_i32 = arith.constant 0 : i32
    return %arg0, %arg1 : i32, i32
  }
}

</mosaic_0001>

<llo_original>
// kernel: svdpp_forward.1
$region0: #{svdpp_forward.1}
  #allocation0 [shape = 'u32[]', space=smem, size = 0x4, offset = 0x4, fixed_abs, tag = 'smem constant byte address 0x4 - core index']
  #allocation1 [shape = 'u32[72,128]{1,0:T(1,128)}', space=vmem, size = 0x9000, scoped, tag = 'internal scratch']
  #allocation2 [shape = 'f32[256,32]{1,0:T(8,128)}', space=vmem, size = 0x20000, scoped, tag = 'scratch operand']
  %s0 = inlined_call_operand.vmem [shape: s8[256,512], index: 0, kind: input, shape index: {}]
  %s1 = inlined_call_operand.vmem [shape: f32[512,32], index: 1, kind: input, shape index: {}]
  %s2 = inlined_call_operand.vmem [shape: f32[256,32], index: 2, kind: input, shape index: {}]
  %s3 = inlined_call_operand.vmem [shape: f32[32,512], index: 3, kind: input, shape index: {}]
  %s4 = inlined_call_operand.hbm [shape: f32[256,512], index: 4, kind: output, shape index: {}]
  %s5 = sld [smem:[#allocation0]]
  $region30: #{svdpp_forward.1} parent=0
    _
  %s7 = ssub.s32 1, %s5
  %s8 = scalar_select 0, %s7, %s5
  $region1: #{svdpp_forward.1} parent=0
    #allocation3 [shape = 'u8[524288]{0}', space=vmem, size = 0x80000, scoped, tag = 'output window, operand 0, single buffered']
    #allocation4 [shape = 's32[1]{0}', space=sflag, size = 0x4, scoped, tag = 'scoped memory for svdpp_forward.1']
    %9 = vsyncpa [#allocation4], 0
    // Predicated region
    $region2: #{svdpp_forward.1} parent=1 // pred_check
      _
    $region3: #{svdpp_forward.1} parent=1 // pred_check_branch
      %11 = sbr.rel (0) target = $region5
    $region4: #{svdpp_forward.1} parent=1 // pred_region
      _
    $region5: #{svdpp_forward.1} parent=1 // pred_fallthru
      _
    // Predicated region
    $region6: #{svdpp_forward.1} parent=1 // pred_check
      _
    $region7: #{svdpp_forward.1} parent=1 // pred_check_branch
      %13 = sbr.rel (0) target = $region9
    $region8: #{svdpp_forward.1} parent=1 // pred_region
      _
    $region9: #{svdpp_forward.1} parent=1 // pred_fallthru
      _
    // Predicated region
    $region10: #{svdpp_forward.1} parent=1 // pred_check
      _
    $region11: #{svdpp_forward.1} parent=1 // pred_check_branch
      %15 = sbr.rel (0) target = $region13
    $region12: #{svdpp_forward.1} parent=1 // pred_region
      _
    $region13: #{svdpp_forward.1} parent=1 // pred_fallthru
      _
    // Predicated region
    $region14: #{svdpp_forward.1} parent=1 // pred_check
      _
    $region15: #{svdpp_forward.1} parent=1 // pred_check_branch
      %17 = sbr.rel (0) target = $region17
    $region16: #{svdpp_forward.1} parent=1 // pred_region
      _
    $region17: #{svdpp_forward.1} parent=1 // pred_fallthru
      _
    %p18 = scmp.eq.s32.totalorder 0, 0
    // Predicated region
    $region18: #{svdpp_forward.1} parent=1 // pred_check
      %p19 = pneg %p18
    $region19: #{svdpp_forward.1} parent=1 // pred_check_branch
      %21 = sbr.rel (%p19) target = $region21
    $region20: #{svdpp_forward.1} parent=1 // pred_region
      %v22 = vld [vmem:[%s2] sm:$0xff]
      %v23 = vld [vmem:[%s2 + $0x8] sm:$0xff]
      %v24 = vld [vmem:[%s2 + $0x10] sm:$0xff]
      %v25 = vld [vmem:[%s2 + $0x18] sm:$0xff]
      %v26 = vld [vmem:[%s2 + $0x20] sm:$0xff]
      %v27 = vld [vmem:[%s2 + $0x28] sm:$0xff]
      %v28 = vld [vmem:[%s2 + $0x30] sm:$0xff]
      %v29 = vld [vmem:[%s2 + $0x38] sm:$0xff]
      %v30 = vld [vmem:[%s2 + $0x40] sm:$0xff]
      %v31 = vld [vmem:[%s2 + $0x48] sm:$0xff]
      %v32 = vld [vmem:[%s2 + $0x50] sm:$0xff]
      %v33 = vld [vmem:[%s2 + $0x58] sm:$0xff]
      %v34 = vld [vmem:[%s2 + $0x60] sm:$0xff]
      %v35 = vld [vmem:[%s2 + $0x68] sm:$0xff]
      %v36 = vld [vmem:[%s2 + $0x70] sm:$0xff]
      %v37 = vld [vmem:[%s2 + $0x78] sm:$0xff]
      %v38 = vld [vmem:[%s2 + $0x80] sm:$0xff]
      %v39 = vld [vmem:[%s2 + $0x88] sm:$0xff]
      %v40 = vld [vmem:[%s2 + $0x90] sm:$0xff]
      %v41 = vld [vmem:[%s2 + $0x98] sm:$0xff]
      %v42 = vld [vmem:[%s2 + $0xa0] sm:$0xff]
      %v43 = vld [vmem:[%s2 + $0xa8] sm:$0xff]
      %v44 = vld [vmem:[%s2 + $0xb0] sm:$0xff]
      %v45 = vld [vmem:[%s2 + $0xb8] sm:$0xff]
      %v46 = vld [vmem:[%s2 + $0xc0] sm:$0xff]
      %v47 = vld [vmem:[%s2 + $0xc8] sm:$0xff]
      %v48 = vld [vmem:[%s2 + $0xd0] sm:$0xff]
      %v49 = vld [vmem:[%s2 + $0xd8] sm:$0xff]
      %v50 = vld [vmem:[%s2 + $0xe0] sm:$0xff]
      %v51 = vld [vmem:[%s2 + $0xe8] sm:$0xff]
      %v52 = vld [vmem:[%s2 + $0xf0] sm:$0xff]
      %v53 = vld [vmem:[%s2 + $0xf8] sm:$0xff]
      %v54 = vld [vmem:[%s0] sm:$0xff]
      %v55 = vld [vmem:[%s0 + $0x8] sm:$0xff]
      %v56 = vld [vmem:[%s0 + $0x10] sm:$0xff]
      %v57 = vld [vmem:[%s0 + $0x18] sm:$0xff]
      %v58 = vld [vmem:[%s0 + $0x20] sm:$0xff]
      %v59 = vld [vmem:[%s0 + $0x28] sm:$0xff]
      %v60 = vld [vmem:[%s0 + $0x30] sm:$0xff]
      %v61 = vld [vmem:[%s0 + $0x38] sm:$0xff]
      %v62 = vld [vmem:[%s0 + $0x40] sm:$0xff]
      %v63 = vld [vmem:[%s0 + $0x48] sm:$0xff]
      %v64 = vld [vmem:[%s0 + $0x50] sm:$0xff]
      %v65 = vld [vmem:[%s0 + $0x58] sm:$0xff]
      %v66 = vld [vmem:[%s0 + $0x60] sm:$0xff]
      %v67 = vld [vmem:[%s0 + $0x68] sm:$0xff]
      %v68 = vld [vmem:[%s0 + $0x70] sm:$0xff]
      %v69 = vld [vmem:[%s0 + $0x78] sm:$0xff]
      %v70 = vld [vmem:[%s0 + $0x80] sm:$0xff]
      %v71 = vld [vmem:[%s0 + $0x88] sm:$0xff]
      %v72 = vld [vmem:[%s0 + $0x90] sm:$0xff]
      %v73 = vld [vmem:[%s0 + $0x98] sm:$0xff]
      %v74 = vld [vmem:[%s0 + $0xa0] sm:$0xff]
      %v75 = vld [vmem:[%s0 + $0xa8] sm:$0xff]
      %v76 = vld [vmem:[%s0 + $0xb0] sm:$0xff]
      %v77 = vld [vmem:[%s0 + $0xb8] sm:$0xff]
      %v78 = vld [vmem:[%s0 + $0xc0] sm:$0xff]
      %v79 = vld [vmem:[%s0 + $0xc8] sm:$0xff]
      %v80 = vld [vmem:[%s0 + $0xd0] sm:$0xff]
      %v81 = vld [vmem:[%s0 + $0xd8] sm:$0xff]
      %v82 = vld [vmem:[%s0 + $0xe0] sm:$0xff]
      %v83 = vld [vmem:[%s0 + $0xe8] sm:$0xff]
      %v84 = vld [vmem:[%s0 + $0xf0] sm:$0xff]
      %v85 = vld [vmem:[%s0 + $0xf8] sm:$0xff]
      %v86 = vunpack.c.0.s8 %v54
      %v87 = vunpack.c.0.s8 %v55
      %v88 = vunpack.c.0.s8 %v56
      %v89 = vunpack.c.0.s8 %v57
      %v90 = vunpack.c.1.s8 %v54
      %v91 = vunpack.c.1.s8 %v55
      %v92 = vunpack.c.1.s8 %v56
      %v93 = vunpack.c.1.s8 %v57
      %v94 = vunpack.c.2.s8 %v54
      %v95 = vunpack.c.2.s8 %v55
      %v96 = vunpack.c.2.s8 %v56
      %v97 = vunpack.c.2.s8 %v57
      %v98 = vunpack.c.3.s8 %v54
      %v99 = vunpack.c.3.s8 %v55
      %v100 = vunpack.c.3.s8 %v56
      %v101 = vunpack.c.3.s8 %v57
      %v102 = vunpack.c.0.s8 %v58
      %v103 = vunpack.c.0.s8 %v59
      %v104 = vunpack.c.0.s8 %v60
      %v105 = vunpack.c.0.s8 %v61
      %v106 = vunpack.c.1.s8 %v58
      %v107 = vunpack.c.1.s8 %v59
      %v108 = vunpack.c.1.s8 %v60
      %v109 = vunpack.c.1.s8 %v61
      %v110 = vunpack.c.2.s8 %v58
      %v111 = vunpack.c.2.s8 %v59
      %v112 = vunpack.c.2.s8 %v60
      %v113 = vunpack.c.2.s8 %v61
      %v114 = vunpack.c.3.s8 %v58
      %v115 = vunpack.c.3.s8 %v59
      %v116 = vunpack.c.3.s8 %v60
      %v117 = vunpack.c.3.s8 %v61
      %v118 = vunpack.c.0.s8 %v62
      %v119 = vunpack.c.0.s8 %v63
      %v120 = vunpack.c.0.s8 %v64
      %v121 = vunpack.c.0.s8 %v65
      %v122 = vunpack.c.1.s8 %v62
      %v123 = vunpack.c.1.s8 %v63
      %v124 = vunpack.c.1.s8 %v64
      %v125 = vunpack.c.1.s8 %v65
      %v126 = vunpack.c.2.s8 %v62
      %v127 = vunpack.c.2.s8 %v63
      %v128 = vunpack.c.2.s8 %v64
      %v129 = vunpack.c.2.s8 %v65
      %v130 = vunpack.c.3.s8 %v62
      %v131 = vunpack.c.3.s8 %v63
      %v132 = vunpack.c.3.s8 %v64
      %v133 = vunpack.c.3.s8 %v65
      %v134 = vunpack.c.0.s8 %v66
      %v135 = vunpack.c.0.s8 %v67
      %v136 = vunpack.c.0.s8 %v68
      %v137 = vunpack.c.0.s8 %v69
      %v138 = vunpack.c.1.s8 %v66
      %v139 = vunpack.c.1.s8 %v67
      %v140 = vunpack.c.1.s8 %v68
      %v141 = vunpack.c.1.s8 %v69
      %v142 = vunpack.c.2.s8 %v66
      %v143 = vunpack.c.2.s8 %v67
      %v144 = vunpack.c.2.s8 %v68
      %v145 = vunpack.c.2.s8 %v69
      %v146 = vunpack.c.3.s8 %v66
      %v147 = vunpack.c.3.s8 %v67
      %v148 = vunpack.c.3.s8 %v68
      %v149 = vunpack.c.3.s8 %v69
      %v150 = vunpack.c.0.s8 %v70
      %v151 = vunpack.c.0.s8 %v71
      %v152 = vunpack.c.0.s8 %v72
      %v153 = vunpack.c.0.s8 %v73
      %v154 = vunpack.c.1.s8 %v70
      %v155 = vunpack.c.1.s8 %v71
      %v156 = vunpack.c.1.s8 %v72
      %v157 = vunpack.c.1.s8 %v73
      %v158 = vunpack.c.2.s8 %v70
      %v159 = vunpack.c.2.s8 %v71
      %v160 = vunpack.c.2.s8 %v72
      %v161 = vunpack.c.2.s8 %v73
      %v162 = vunpack.c.3.s8 %v70
      %v163 = vunpack.c.3.s8 %v71
      %v164 = vunpack.c.3.s8 %v72
      %v165 = vunpack.c.3.s8 %v73
      %v166 = vunpack.c.0.s8 %v74
      %v167 = vunpack.c.0.s8 %v75
      %v168 = vunpack.c.0.s8 %v76
      %v169 = vunpack.c.0.s8 %v77
      %v170 = vunpack.c.1.s8 %v74
      %v171 = vunpack.c.1.s8 %v75
      %v172 = vunpack.c.1.s8 %v76
      %v173 = vunpack.c.1.s8 %v77
      %v174 = vunpack.c.2.s8 %v74
      %v175 = vunpack.c.2.s8 %v75
      %v176 = vunpack.c.2.s8 %v76
      %v177 = vunpack.c.2.s8 %v77
      %v178 = vunpack.c.3.s8 %v74
      %v179 = vunpack.c.3.s8 %v75
      %v180 = vunpack.c.3.s8 %v76
      %v181 = vunpack.c.3.s8 %v77
      %v182 = vunpack.c.0.s8 %v78
      %v183 = vunpack.c.0.s8 %v79
      %v184 = vunpack.c.0.s8 %v80
      %v185 = vunpack.c.0.s8 %v81
      %v186 = vunpack.c.1.s8 %v78
      %v187 = vunpack.c.1.s8 %v79
      %v188 = vunpack.c.1.s8 %v80
      %v189 = vunpack.c.1.s8 %v81
      %v190 = vunpack.c.2.s8 %v78
      %v191 = vunpack.c.2.s8 %v79
      %v192 = vunpack.c.2.s8 %v80
      %v193 = vunpack.c.2.s8 %v81
      %v194 = vunpack.c.3.s8 %v78
      %v195 = vunpack.c.3.s8 %v79
      %v196 = vunpack.c.3.s8 %v80
      %v197 = vunpack.c.3.s8 %v81
      %v198 = vunpack.c.0.s8 %v82
      %v199 = vunpack.c.0.s8 %v83
      %v200 = vunpack.c.0.s8 %v84
      %v201 = vunpack.c.0.s8 %v85
      %v202 = vunpack.c.1.s8 %v82
      %v203 = vunpack.c.1.s8 %v83
      %v204 = vunpack.c.1.s8 %v84
      %v205 = vunpack.c.1.s8 %v85
      %v206 = vunpack.c.2.s8 %v82
      %v207 = vunpack.c.2.s8 %v83
      %v208 = vunpack.c.2.s8 %v84
      %v209 = vunpack.c.2.s8 %v85
      %v210 = vunpack.c.3.s8 %v82
      %v211 = vunpack.c.3.s8 %v83
      %v212 = vunpack.c.3.s8 %v84
      %v213 = vunpack.c.3.s8 %v85
      %v214 = vcvt.s32.f32 %v86
      %v215 = vcvt.s32.f32 %v87
      %v216 = vcvt.s32.f32 %v88
      %v217 = vcvt.s32.f32 %v89
      %v218 = vcvt.s32.f32 %v90
      %v219 = vcvt.s32.f32 %v91
      %v220 = vcvt.s32.f32 %v92
      %v221 = vcvt.s32.f32 %v93
      %v222 = vcvt.s32.f32 %v94
      %v223 = vcvt.s32.f32 %v95
      %v224 = vcvt.s32.f32 %v96
      %v225 = vcvt.s32.f32 %v97
      %v226 = vcvt.s32.f32 %v98
      %v227 = vcvt.s32.f32 %v99
      %v228 = vcvt.s32.f32 %v100
      %v229 = vcvt.s32.f32 %v101
      %v230 = vcvt.s32.f32 %v102
      %v231 = vcvt.s32.f32 %v103
      %v232 = vcvt.s32.f32 %v104
      %v233 = vcvt.s32.f32 %v105
      %v234 = vcvt.s32.f32 %v106
      %v235 = vcvt.s32.f32 %v107
      %v236 = vcvt.s32.f32 %v108
      %v237 = vcvt.s32.f32 %v109
      %v238 = vcvt.s32.f32 %v110
      %v239 = vcvt.s32.f32 %v111
      %v240 = vcvt.s32.f32 %v112
      %v241 = vcvt.s32.f32 %v113
      %v242 = vcvt.s32.f32 %v114
      %v243 = vcvt.s32.f32 %v115
      %v244 = vcvt.s32.f32 %v116
      %v245 = vcvt.s32.f32 %v117
      %v246 = vcvt.s32.f32 %v118
      %v247 = vcvt.s32.f32 %v119
      %v248 = vcvt.s32.f32 %v120
      %v249 = vcvt.s32.f32 %v121
      %v250 = vcvt.s32.f32 %v122
      %v251 = vcvt.s32.f32 %v123
      %v252 = vcvt.s32.f32 %v124
      %v253 = vcvt.s32.f32 %v125
      %v254 = vcvt.s32.f32 %v126
      %v255 = vcvt.s32.f32 %v127
      %v256 = vcvt.s32.f32 %v128
      %v257 = vcvt.s32.f32 %v129
      %v258 = vcvt.s32.f32 %v130
      %v259 = vcvt.s32.f32 %v131
      %v260 = vcvt.s32.f32 %v132
      %v261 = vcvt.s32.f32 %v133
      %v262 = vcvt.s32.f32 %v134
      %v263 = vcvt.s32.f32 %v135
      %v264 = vcvt.s32.f32 %v136
      %v265 = vcvt.s32.f32 %v137
      %v266 = vcvt.s32.f32 %v138
      %v267 = vcvt.s32.f32 %v139
      %v268 = vcvt.s32.f32 %v140
      %v269 = vcvt.s32.f32 %v141
      %v270 = vcvt.s32.f32 %v142
      %v271 = vcvt.s32.f32 %v143
      %v272 = vcvt.s32.f32 %v144
      %v273 = vcvt.s32.f32 %v145
      %v274 = vcvt.s32.f32 %v146
      %v275 = vcvt.s32.f32 %v147
      %v276 = vcvt.s32.f32 %v148
      %v277 = vcvt.s32.f32 %v149
      %v278 = vcvt.s32.f32 %v150
      %v279 = vcvt.s32.f32 %v151
      %v280 = vcvt.s32.f32 %v152
      %v281 = vcvt.s32.f32 %v153
      %v282 = vcvt.s32.f32 %v154
      %v283 = vcvt.s32.f32 %v155
      %v284 = vcvt.s32.f32 %v156
      %v285 = vcvt.s32.f32 %v157
      %v286 = vcvt.s32.f32 %v158
      %v287 = vcvt.s32.f32 %v159
      %v288 = vcvt.s32.f32 %v160
      %v289 = vcvt.s32.f32 %v161
      %v290 = vcvt.s32.f32 %v162
      %v291 = vcvt.s32.f32 %v163
      %v292 = vcvt.s32.f32 %v164
      %v293 = vcvt.s32.f32 %v165
      %v294 = vcvt.s32.f32 %v166
      %v295 = vcvt.s32.f32 %v167
      %v296 = vcvt.s32.f32 %v168
      %v297 = vcvt.s32.f32 %v169
      %v298 = vcvt.s32.f32 %v170
      %v299 = vcvt.s32.f32 %v171
      %v300 = vcvt.s32.f32 %v172
      %v301 = vcvt.s32.f32 %v173
      %v302 = vcvt.s32.f32 %v174
      %v303 = vcvt.s32.f32 %v175
      %v304 = vcvt.s32.f32 %v176
      %v305 = vcvt.s32.f32 %v177
      %v306 = vcvt.s32.f32 %v178
      %v307 = vcvt.s32.f32 %v179
      %v308 = vcvt.s32.f32 %v180
      %v309 = vcvt.s32.f32 %v181
      %v310 = vcvt.s32.f32 %v182
      %v311 = vcvt.s32.f32 %v183
      %v312 = vcvt.s32.f32 %v184
      %v313 = vcvt.s32.f32 %v185
      %v314 = vcvt.s32.f32 %v186
      %v315 = vcvt.s32.f32 %v187
      %v316 = vcvt.s32.f32 %v188
      %v317 = vcvt.s32.f32 %v189
      %v318 = vcvt.s32.f32 %v190
      %v319 = vcvt.s32.f32 %v191
      %v320 = vcvt.s32.f32 %v192
      %v321 = vcvt.s32.f32 %v193
      %v322 = vcvt.s32.f32 %v194
      %v323 = vcvt.s32.f32 %v195
      %v324 = vcvt.s32.f32 %v196
      %v325 = vcvt.s32.f32 %v197
      %v326 = vcvt.s32.f32 %v198
      %v327 = vcvt.s32.f32 %v199
      %v328 = vcvt.s32.f32 %v200
      %v329 = vcvt.s32.f32 %v201
      %v330 = vcvt.s32.f32 %v202
      %v331 = vcvt.s32.f32 %v203
      %v332 = vcvt.s32.f32 %v204
      %v333 = vcvt.s32.f32 %v205
      %v334 = vcvt.s32.f32 %v206
      %v335 = vcvt.s32.f32 %v207
      %v336 = vcvt.s32.f32 %v208
      %v337 = vcvt.s32.f32 %v209
      %v338 = vcvt.s32.f32 %v210
      %v339 = vcvt.s32.f32 %v211
      %v340 = vcvt.s32.f32 %v212
      %v341 = vcvt.s32.f32 %v213
      %v342 = vld [vmem:[%s1] sm:$0xff]
      %v343 = vld [vmem:[%s1 + $0x8] sm:$0xff]
      %v344 = vld [vmem:[%s1 + $0x10] sm:$0xff]
      %v345 = vld [vmem:[%s1 + $0x18] sm:$0xff]
      %v346 = vld [vmem:[%s1 + $0x20] sm:$0xff]
      %v347 = vld [vmem:[%s1 + $0x28] sm:$0xff]
      %v348 = vld [vmem:[%s1 + $0x30] sm:$0xff]
      %v349 = vld [vmem:[%s1 + $0x38] sm:$0xff]
      %v350 = vld [vmem:[%s1 + $0x40] sm:$0xff]
      %v351 = vld [vmem:[%s1 + $0x48] sm:$0xff]
      %v352 = vld [vmem:[%s1 + $0x50] sm:$0xff]
      %v353 = vld [vmem:[%s1 + $0x58] sm:$0xff]
      %v354 = vld [vmem:[%s1 + $0x60] sm:$0xff]
      %v355 = vld [vmem:[%s1 + $0x68] sm:$0xff]
      %v356 = vld [vmem:[%s1 + $0x70] sm:$0xff]
      %v357 = vld [vmem:[%s1 + $0x78] sm:$0xff]
      %v358 = vld [vmem:[%s1 + $0x80] sm:$0xff]
      %v359 = vld [vmem:[%s1 + $0x88] sm:$0xff]
      %v360 = vld [vmem:[%s1 + $0x90] sm:$0xff]
      %v361 = vld [vmem:[%s1 + $0x98] sm:$0xff]
      %v362 = vld [vmem:[%s1 + $0xa0] sm:$0xff]
      %v363 = vld [vmem:[%s1 + $0xa8] sm:$0xff]
      %v364 = vld [vmem:[%s1 + $0xb0] sm:$0xff]
      %v365 = vld [vmem:[%s1 + $0xb8] sm:$0xff]
      %v366 = vld [vmem:[%s1 + $0xc0] sm:$0xff]
      %v367 = vld [vmem:[%s1 + $0xc8] sm:$0xff]
      %v368 = vld [vmem:[%s1 + $0xd0] sm:$0xff]
      %v369 = vld [vmem:[%s1 + $0xd8] sm:$0xff]
      %v370 = vld [vmem:[%s1 + $0xe0] sm:$0xff]
      %v371 = vld [vmem:[%s1 + $0xe8] sm:$0xff]
      %v372 = vld [vmem:[%s1 + $0xf0] sm:$0xff]
      %v373 = vld [vmem:[%s1 + $0xf8] sm:$0xff]
      %v374 = vld [vmem:[%s1 + $0x100] sm:$0xff]
      %v375 = vld [vmem:[%s1 + $0x108] sm:$0xff]
      %v376 = vld [vmem:[%s1 + $0x110] sm:$0xff]
      %v377 = vld [vmem:[%s1 + $0x118] sm:$0xff]
      %v378 = vld [vmem:[%s1 + $0x120] sm:$0xff]
      %v379 = vld [vmem:[%s1 + $0x128] sm:$0xff]
      %v380 = vld [vmem:[%s1 + $0x130] sm:$0xff]
      %v381 = vld [vmem:[%s1 + $0x138] sm:$0xff]
      %v382 = vld [vmem:[%s1 + $0x140] sm:$0xff]
      %v383 = vld [vmem:[%s1 + $0x148] sm:$0xff]
      %v384 = vld [vmem:[%s1 + $0x150] sm:$0xff]
      %v385 = vld [vmem:[%s1 + $0x158] sm:$0xff]
      %v386 = vld [vmem:[%s1 + $0x160] sm:$0xff]
      %v387 = vld [vmem:[%s1 + $0x168] sm:$0xff]
      %v388 = vld [vmem:[%s1 + $0x170] sm:$0xff]
      %v389 = vld [vmem:[%s1 + $0x178] sm:$0xff]
      %v390 = vld [vmem:[%s1 + $0x180] sm:$0xff]
      %v391 = vld [vmem:[%s1 + $0x188] sm:$0xff]
      %v392 = vld [vmem:[%s1 + $0x190] sm:$0xff]
      %v393 = vld [vmem:[%s1 + $0x198] sm:$0xff]
      %v394 = vld [vmem:[%s1 + $0x1a0] sm:$0xff]
      %v395 = vld [vmem:[%s1 + $0x1a8] sm:$0xff]
      %v396 = vld [vmem:[%s1 + $0x1b0] sm:$0xff]
      %v397 = vld [vmem:[%s1 + $0x1b8] sm:$0xff]
      %v398 = vld [vmem:[%s1 + $0x1c0] sm:$0xff]
      %v399 = vld [vmem:[%s1 + $0x1c8] sm:$0xff]
      %v400 = vld [vmem:[%s1 + $0x1d0] sm:$0xff]
      %v401 = vld [vmem:[%s1 + $0x1d8] sm:$0xff]
      %v402 = vld [vmem:[%s1 + $0x1e0] sm:$0xff]
      %v403 = vld [vmem:[%s1 + $0x1e8] sm:$0xff]
      %v404 = vld [vmem:[%s1 + $0x1f0] sm:$0xff]
      %v405 = vld [vmem:[%s1 + $0x1f8] sm:$0xff]
      %406 = vmatpush.msra.mxu0 %v357
      %407 = vmatpush.msra.mxu0 %v356
      %408 = vmatpush.msra.mxu0 %v355
      %409 = vmatpush.msra.mxu0 %v354
      %410 = vmatpush.msra.mxu0 %v353
      %411 = vmatpush.msra.mxu0 %v352
      %412 = vmatpush.msra.mxu0 %v351
      %413 = vmatpush.msra.mxu0 %v350
      %414 = vmatpush.msra.mxu0 %v349
      %415 = vmatpush.msra.mxu0 %v348
      %416 = vmatpush.msra.mxu0 %v347
      %417 = vmatpush.msra.mxu0 %v346
      %418 = vmatpush.msra.mxu0 %v345
      %419 = vmatpush.msra.mxu0 %v344
      %420 = vmatpush.msra.mxu0 %v343
      %421 = vmatpush.msra.mxu0 %v342
      %422 = vmatmul.f32.gmra.mxu0 %v214
      %v423 = vpop.f32.mrf.mxu0
      %v424 = vadd.f32 0.0, %v423
      %425 = vmatmul.f32.gmra.mxu0 %v218
      %v426 = vpop.f32.mrf.mxu0
      %v427 = vadd.f32 0.0, %v426
      %428 = vmatmul.f32.gmra.mxu0 %v222
      %v429 = vpop.f32.mrf.mxu0
      %v430 = vadd.f32 0.0, %v429
      %431 = vmatmul.f32.gmra.mxu0 %v226
      %v432 = vpop.f32.mrf.mxu0
      %v433 = vadd.f32 0.0, %v432
      %434 = vmatmul.f32.gmra.mxu0 %v230
      %v435 = vpop.f32.mrf.mxu0
      %v436 = vadd.f32 0.0, %v435
      %437 = vmatmul.f32.gmra.mxu0 %v234
      %v438 = vpop.f32.mrf.mxu0
      %v439 = vadd.f32 0.0, %v438
      %440 = vmatmul.f32.gmra.mxu0 %v238
      %v441 = vpop.f32.mrf.mxu0
      %v442 = vadd.f32 0.0, %v441
      %443 = vmatmul.f32.gmra.mxu0 %v242
      %v444 = vpop.f32.mrf.mxu0
      %v445 = vadd.f32 0.0, %v444
      %446 = vmatmul.f32.gmra.mxu0 %v246
      %v447 = vpop.f32.mrf.mxu0
      %v448 = vadd.f32 0.0, %v447
      %449 = vmatmul.f32.gmra.mxu0 %v250
      %v450 = vpop.f32.mrf.mxu0
      %v451 = vadd.f32 0.0, %v450
      %452 = vmatmul.f32.gmra.mxu0 %v254
      %v453 = vpop.f32.mrf.mxu0
      %v454 = vadd.f32 0.0, %v453
      %455 = vmatmul.f32.gmra.mxu0 %v258
      %v456 = vpop.f32.mrf.mxu0
      %v457 = vadd.f32 0.0, %v456
      %458 = vmatmul.f32.gmra.mxu0 %v262
      %v459 = vpop.f32.mrf.mxu0
      %v460 = vadd.f32 0.0, %v459
      %461 = vmatmul.f32.gmra.mxu0 %v266
      %v462 = vpop.f32.mrf.mxu0
      %v463 = vadd.f32 0.0, %v462
      %464 = vmatmul.f32.gmra.mxu0 %v270
      %v465 = vpop.f32.mrf.mxu0
      %v466 = vadd.f32 0.0, %v465
      %467 = vmatmul.f32.gmra.mxu0 %v274
      %v468 = vpop.f32.mrf.mxu0
      %v469 = vadd.f32 0.0, %v468
      %470 = vmatmul.f32.gmra.mxu0 %v278
      %v471 = vpop.f32.mrf.mxu0
      %v472 = vadd.f32 0.0, %v471
      %473 = vmatmul.f32.gmra.mxu0 %v282
      %v474 = vpop.f32.mrf.mxu0
      %v475 = vadd.f32 0.0, %v474
      %476 = vmatmul.f32.gmra.mxu0 %v286
      %v477 = vpop.f32.mrf.mxu0
      %v478 = vadd.f32 0.0, %v477
      %479 = vmatmul.f32.gmra.mxu0 %v290
      %v480 = vpop.f32.mrf.mxu0
      %v481 = vadd.f32 0.0, %v480
      %482 = vmatmul.f32.gmra.mxu0 %v294
      %v483 = vpop.f32.mrf.mxu0
      %v484 = vadd.f32 0.0, %v483
      %485 = vmatmul.f32.gmra.mxu0 %v298
      %v486 = vpop.f32.mrf.mxu0
      %v487 = vadd.f32 0.0, %v486
      %488 = vmatmul.f32.gmra.mxu0 %v302
      %v489 = vpop.f32.mrf.mxu0
      %v490 = vadd.f32 0.0, %v489
      %491 = vmatmul.f32.gmra.mxu0 %v306
      %v492 = vpop.f32.mrf.mxu0
      %v493 = vadd.f32 0.0, %v492
      %494 = vmatmul.f32.gmra.mxu0 %v310
      %v495 = vpop.f32.mrf.mxu0
      %v496 = vadd.f32 0.0, %v495
      %497 = vmatmul.f32.gmra.mxu0 %v314
      %v498 = vpop.f32.mrf.mxu0
      %v499 = vadd.f32 0.0, %v498
      %500 = vmatmul.f32.gmra.mxu0 %v318
      %v501 = vpop.f32.mrf.mxu0
      %v502 = vadd.f32 0.0, %v501
      %503 = vmatmul.f32.gmra.mxu0 %v322
      %v504 = vpop.f32.mrf.mxu0
      %v505 = vadd.f32 0.0, %v504
      %506 = vmatmul.f32.gmra.mxu0 %v326
      %v507 = vpop.f32.mrf.mxu0
      %v508 = vadd.f32 0.0, %v507
      %509 = vmatmul.f32.gmra.mxu0 %v330
      %v510 = vpop.f32.mrf.mxu0
      %v511 = vadd.f32 0.0, %v510
      %512 = vmatmul.f32.gmra.mxu0 %v334
      %v513 = vpop.f32.mrf.mxu0
      %v514 = vadd.f32 0.0, %v513
      %515 = vmatmul.f32.gmra.mxu0 %v338
      %v516 = vpop.f32.mrf.mxu0
      %v517 = vadd.f32 0.0, %v516
      %518 = vdwg.mxu0
      %519 = vmatpush.msra.mxu0 %v373
      %520 = vmatpush.msra.mxu0 %v372
      %521 = vmatpush.msra.mxu0 %v371
      %522 = vmatpush.msra.mxu0 %v370
      %523 = vmatpush.msra.mxu0 %v369
      %524 = vmatpush.msra.mxu0 %v368
      %525 = vmatpush.msra.mxu0 %v367
      %526 = vmatpush.msra.mxu0 %v366
      %527 = vmatpush.msra.mxu0 %v365
      %528 = vmatpush.msra.mxu0 %v364
      %529 = vmatpush.msra.mxu0 %v363
      %530 = vmatpush.msra.mxu0 %v362
      %531 = vmatpush.msra.mxu0 %v361
      %532 = vmatpush.msra.mxu0 %v360
      %533 = vmatpush.msra.mxu0 %v359
      %534 = vmatpush.msra.mxu0 %v358
      %535 = vmatmul.f32.gmra.mxu0 %v215
      %v536 = vpop.f32.mrf.mxu0
      %v537 = vadd.f32 %v424, %v536
      %538 = vmatmul.f32.gmra.mxu0 %v219
      %v539 = vpop.f32.mrf.mxu0
      %v540 = vadd.f32 %v427, %v539
      %541 = vmatmul.f32.gmra.mxu0 %v223
      %v542 = vpop.f32.mrf.mxu0
      %v543 = vadd.f32 %v430, %v542
      %544 = vmatmul.f32.gmra.mxu0 %v227
      %v545 = vpop.f32.mrf.mxu0
      %v546 = vadd.f32 %v433, %v545
      %547 = vmatmul.f32.gmra.mxu0 %v231
      %v548 = vpop.f32.mrf.mxu0
      %v549 = vadd.f32 %v436, %v548
      %550 = vmatmul.f32.gmra.mxu0 %v235
      %v551 = vpop.f32.mrf.mxu0
      %v552 = vadd.f32 %v439, %v551
      %553 = vmatmul.f32.gmra.mxu0 %v239
      %v554 = vpop.f32.mrf.mxu0
      %v555 = vadd.f32 %v442, %v554
      %556 = vmatmul.f32.gmra.mxu0 %v243
      %v557 = vpop.f32.mrf.mxu0
      %v558 = vadd.f32 %v445, %v557
      %559 = vmatmul.f32.gmra.mxu0 %v247
      %v560 = vpop.f32.mrf.mxu0
      %v561 = vadd.f32 %v448, %v560
      %562 = vmatmul.f32.gmra.mxu0 %v251
      %v563 = vpop.f32.mrf.mxu0
      %v564 = vadd.f32 %v451, %v563
      %565 = vmatmul.f32.gmra.mxu0 %v255
      %v566 = vpop.f32.mrf.mxu0
      %v567 = vadd.f32 %v454, %v566
      %568 = vmatmul.f32.gmra.mxu0 %v259
      %v569 = vpop.f32.mrf.mxu0
      %v570 = vadd.f32 %v457, %v569
      %571 = vmatmul.f32.gmra.mxu0 %v263
      %v572 = vpop.f32.mrf.mxu0
      %v573 = vadd.f32 %v460, %v572
      %574 = vmatmul.f32.gmra.mxu0 %v267
      %v575 = vpop.f32.mrf.mxu0
      %v576 = vadd.f32 %v463, %v575
      %577 = vmatmul.f32.gmra.mxu0 %v271
      %v578 = vpop.f32.mrf.mxu0
      %v579 = vadd.f32 %v466, %v578
      %580 = vmatmul.f32.gmra.mxu0 %v275
      %v581 = vpop.f32.mrf.mxu0
      %v582 = vadd.f32 %v469, %v581
      %583 = vmatmul.f32.gmra.mxu0 %v279
      %v584 = vpop.f32.mrf.mxu0
      %v585 = vadd.f32 %v472, %v584
      %586 = vmatmul.f32.gmra.mxu0 %v283
      %v587 = vpop.f32.mrf.mxu0
      %v588 = vadd.f32 %v475, %v587
      %589 = vmatmul.f32.gmra.mxu0 %v287
      %v590 = vpop.f32.mrf.mxu0
      %v591 = vadd.f32 %v478, %v590
      %592 = vmatmul.f32.gmra.mxu0 %v291
      %v593 = vpop.f32.mrf.mxu0
      %v594 = vadd.f32 %v481, %v593
      %595 = vmatmul.f32.gmra.mxu0 %v295
      %v596 = vpop.f32.mrf.mxu0
      %v597 = vadd.f32 %v484, %v596
      %598 = vmatmul.f32.gmra.mxu0 %v299
      %v599 = vpop.f32.mrf.mxu0
      %v600 = vadd.f32 %v487, %v599
      %601 = vmatmul.f32.gmra.mxu0 %v303
      %v602 = vpop.f32.mrf.mxu0
      %v603 = vadd.f32 %v490, %v602
      %604 = vmatmul.f32.gmra.mxu0 %v307
      %v605 = vpop.f32.mrf.mxu0
      %v606 = vadd.f32 %v493, %v605
      %607 = vmatmul.f32.gmra.mxu0 %v311
      %v608 = vpop.f32.mrf.mxu0
      %v609 = vadd.f32 %v496, %v608
      %610 = vmatmul.f32.gmra.mxu0 %v315
      %v611 = vpop.f32.mrf.mxu0
      %v612 = vadd.f32 %v499, %v611
      %613 = vmatmul.f32.gmra.mxu0 %v319
      %v614 = vpop.f32.mrf.mxu0
      %v615 = vadd.f32 %v502, %v614
      %616 = vmatmul.f32.gmra.mxu0 %v323
      %v617 = vpop.f32.mrf.mxu0
      %v618 = vadd.f32 %v505, %v617
      %619 = vmatmul.f32.gmra.mxu0 %v327
      %v620 = vpop.f32.mrf.mxu0
      %v621 = vadd.f32 %v508, %v620
      %622 = vmatmul.f32.gmra.mxu0 %v331
      %v623 = vpop.f32.mrf.mxu0
      %v624 = vadd.f32 %v511, %v623
      %625 = vmatmul.f32.gmra.mxu0 %v335
      %v626 = vpop.f32.mrf.mxu0
      %v627 = vadd.f32 %v514, %v626
      %628 = vmatmul.f32.gmra.mxu0 %v339
      %v629 = vpop.f32.mrf.mxu0
      %v630 = vadd.f32 %v517, %v629
      %631 = vdwg.mxu0
      %632 = vmatpush.msra.mxu0 %v389
      %633 = vmatpush.msra.mxu0 %v388
      %634 = vmatpush.msra.mxu0 %v387
      %635 = vmatpush.msra.mxu0 %v386
      %636 = vmatpush.msra.mxu0 %v385
      %637 = vmatpush.msra.mxu0 %v384
      %638 = vmatpush.msra.mxu0 %v383
      %639 = vmatpush.msra.mxu0 %v382
      %640 = vmatpush.msra.mxu0 %v381
      %641 = vmatpush.msra.mxu0 %v380
      %642 = vmatpush.msra.mxu0 %v379
      %643 = vmatpush.msra.mxu0 %v378
      %644 = vmatpush.msra.mxu0 %v377
      %645 = vmatpush.msra.mxu0 %v376
      %646 = vmatpush.msra.mxu0 %v375
      %647 = vmatpush.msra.mxu0 %v374
      %648 = vmatmul.f32.gmra.mxu0 %v216
      %v649 = vpop.f32.mrf.mxu0
      %v650 = vadd.f32 %v537, %v649
      %651 = vmatmul.f32.gmra.mxu0 %v220
      %v652 = vpop.f32.mrf.mxu0
      %v653 = vadd.f32 %v540, %v652
      %654 = vmatmul.f32.gmra.mxu0 %v224
      %v655 = vpop.f32.mrf.mxu0
      %v656 = vadd.f32 %v543, %v655
      %657 = vmatmul.f32.gmra.mxu0 %v228
      %v658 = vpop.f32.mrf.mxu0
      %v659 = vadd.f32 %v546, %v658
      %660 = vmatmul.f32.gmra.mxu0 %v232
      %v661 = vpop.f32.mrf.mxu0
      %v662 = vadd.f32 %v549, %v661
      %663 = vmatmul.f32.gmra.mxu0 %v236
      %v664 = vpop.f32.mrf.mxu0
      %v665 = vadd.f32 %v552, %v664
      %666 = vmatmul.f32.gmra.mxu0 %v240
      %v667 = vpop.f32.mrf.mxu0
      %v668 = vadd.f32 %v555, %v667
      %669 = vmatmul.f32.gmra.mxu0 %v244
      %v670 = vpop.f32.mrf.mxu0
      %v671 = vadd.f32 %v558, %v670
      %672 = vmatmul.f32.gmra.mxu0 %v248
      %v673 = vpop.f32.mrf.mxu0
      %v674 = vadd.f32 %v561, %v673
      %675 = vmatmul.f32.gmra.mxu0 %v252
      %v676 = vpop.f32.mrf.mxu0
      %v677 = vadd.f32 %v564, %v676
      %678 = vmatmul.f32.gmra.mxu0 %v256
      %v679 = vpop.f32.mrf.mxu0
      %v680 = vadd.f32 %v567, %v679
      %681 = vmatmul.f32.gmra.mxu0 %v260
      %v682 = vpop.f32.mrf.mxu0
      %v683 = vadd.f32 %v570, %v682
      %684 = vmatmul.f32.gmra.mxu0 %v264
      %v685 = vpop.f32.mrf.mxu0
      %v686 = vadd.f32 %v573, %v685
      %687 = vmatmul.f32.gmra.mxu0 %v268
      %v688 = vpop.f32.mrf.mxu0
      %v689 = vadd.f32 %v576, %v688
      %690 = vmatmul.f32.gmra.mxu0 %v272
      %v691 = vpop.f32.mrf.mxu0
      %v692 = vadd.f32 %v579, %v691
      %693 = vmatmul.f32.gmra.mxu0 %v276
      %v694 = vpop.f32.mrf.mxu0
      %v695 = vadd.f32 %v582, %v694
      %696 = vmatmul.f32.gmra.mxu0 %v280
      %v697 = vpop.f32.mrf.mxu0
      %v698 = vadd.f32 %v585, %v697
      %699 = vmatmul.f32.gmra.mxu0 %v284
      %v700 = vpop.f32.mrf.mxu0
      %v701 = vadd.f32 %v588, %v700
      %702 = vmatmul.f32.gmra.mxu0 %v288
      %v703 = vpop.f32.mrf.mxu0
      %v704 = vadd.f32 %v591, %v703
      %705 = vmatmul.f32.gmra.mxu0 %v292
      %v706 = vpop.f32.mrf.mxu0
      %v707 = vadd.f32 %v594, %v706
      %708 = vmatmul.f32.gmra.mxu0 %v296
      %v709 = vpop.f32.mrf.mxu0
      %v710 = vadd.f32 %v597, %v709
      %711 = vmatmul.f32.gmra.mxu0 %v300
      %v712 = vpop.f32.mrf.mxu0
      %v713 = vadd.f32 %v600, %v712
      %714 = vmatmul.f32.gmra.mxu0 %v304
      %v715 = vpop.f32.mrf.mxu0
      %v716 = vadd.f32 %v603, %v715
      %717 = vmatmul.f32.gmra.mxu0 %v308
      %v718 = vpop.f32.mrf.mxu0
      %v719 = vadd.f32 %v606, %v718
      %720 = vmatmul.f32.gmra.mxu0 %v312
      %v721 = vpop.f32.mrf.mxu0
      %v722 = vadd.f32 %v609, %v721
      %723 = vmatmul.f32.gmra.mxu0 %v316
      %v724 = vpop.f32.mrf.mxu0
      %v725 = vadd.f32 %v612, %v724
      %726 = vmatmul.f32.gmra.mxu0 %v320
      %v727 = vpop.f32.mrf.mxu0
      %v728 = vadd.f32 %v615, %v727
      %729 = vmatmul.f32.gmra.mxu0 %v324
      %v730 = vpop.f32.mrf.mxu0
      %v731 = vadd.f32 %v618, %v730
      %732 = vmatmul.f32.gmra.mxu0 %v328
      %v733 = vpop.f32.mrf.mxu0
      %v734 = vadd.f32 %v621, %v733
      %735 = vmatmul.f32.gmra.mxu0 %v332
      %v736 = vpop.f32.mrf.mxu0
      %v737 = vadd.f32 %v624, %v736
      %738 = vmatmul.f32.gmra.mxu0 %v336
      %v739 = vpop.f32.mrf.mxu0
      %v740 = vadd.f32 %v627, %v739
      %741 = vmatmul.f32.gmra.mxu0 %v340
      %v742 = vpop.f32.mrf.mxu0
      %v743 = vadd.f32 %v630, %v742
      %744 = vdwg.mxu0
      %745 = vmatpush.msra.mxu0 %v405
      %746 = vmatpush.msra.mxu0 %v404
      %747 = vmatpush.msra.mxu0 %v403
      %748 = vmatpush.msra.mxu0 %v402
      %749 = vmatpush.msra.mxu0 %v401
      %750 = vmatpush.msra.mxu0 %v400
      %751 = vmatpush.msra.mxu0 %v399
      %752 = vmatpush.msra.mxu0 %v398
      %753 = vmatpush.msra.mxu0 %v397
      %754 = vmatpush.msra.mxu0 %v396
      %755 = vmatpush.msra.mxu0 %v395
      %756 = vmatpush.msra.mxu0 %v394
      %757 = vmatpush.msra.mxu0 %v393
      %758 = vmatpush.msra.mxu0 %v392
      %759 = vmatpush.msra.mxu0 %v391
      %760 = vmatpush.msra.mxu0 %v390
      %761 = vmatmul.f32.gmra.mxu0 %v217
      %v762 = vpop.f32.mrf.mxu0
      %v763 = vadd.f32 %v650, %v762
      %764 = vmatmul.f32.gmra.mxu0 %v221
      %v765 = vpop.f32.mrf.mxu0
      %v766 = vadd.f32 %v653, %v765
      %767 = vmatmul.f32.gmra.mxu0 %v225
      %v768 = vpop.f32.mrf.mxu0
      %v769 = vadd.f32 %v656, %v768
      %770 = vmatmul.f32.gmra.mxu0 %v229
      %v771 = vpop.f32.mrf.mxu0
      %v772 = vadd.f32 %v659, %v771
      %773 = vmatmul.f32.gmra.mxu0 %v233
      %v774 = vpop.f32.mrf.mxu0
      %v775 = vadd.f32 %v662, %v774
      %776 = vmatmul.f32.gmra.mxu0 %v237
      %v777 = vpop.f32.mrf.mxu0
      %v778 = vadd.f32 %v665, %v777
      %779 = vmatmul.f32.gmra.mxu0 %v241
      %v780 = vpop.f32.mrf.mxu0
      %v781 = vadd.f32 %v668, %v780
      %782 = vmatmul.f32.gmra.mxu0 %v245
      %v783 = vpop.f32.mrf.mxu0
      %v784 = vadd.f32 %v671, %v783
      %785 = vmatmul.f32.gmra.mxu0 %v249
      %v786 = vpop.f32.mrf.mxu0
      %v787 = vadd.f32 %v674, %v786
      %788 = vmatmul.f32.gmra.mxu0 %v253
      %v789 = vpop.f32.mrf.mxu0
      %v790 = vadd.f32 %v677, %v789
      %791 = vmatmul.f32.gmra.mxu0 %v257
      %v792 = vpop.f32.mrf.mxu0
      %v793 = vadd.f32 %v680, %v792
      %794 = vmatmul.f32.gmra.mxu0 %v261
      %v795 = vpop.f32.mrf.mxu0
      %v796 = vadd.f32 %v683, %v795
      %797 = vmatmul.f32.gmra.mxu0 %v265
      %v798 = vpop.f32.mrf.mxu0
      %v799 = vadd.f32 %v686, %v798
      %800 = vmatmul.f32.gmra.mxu0 %v269
      %v801 = vpop.f32.mrf.mxu0
      %v802 = vadd.f32 %v689, %v801
      %803 = vmatmul.f32.gmra.mxu0 %v273
      %v804 = vpop.f32.mrf.mxu0
      %v805 = vadd.f32 %v692, %v804
      %806 = vmatmul.f32.gmra.mxu0 %v277
      %v807 = vpop.f32.mrf.mxu0
      %v808 = vadd.f32 %v695, %v807
      %809 = vmatmul.f32.gmra.mxu0 %v281
      %v810 = vpop.f32.mrf.mxu0
      %v811 = vadd.f32 %v698, %v810
      %812 = vmatmul.f32.gmra.mxu0 %v285
      %v813 = vpop.f32.mrf.mxu0
      %v814 = vadd.f32 %v701, %v813
      %815 = vmatmul.f32.gmra.mxu0 %v289
      %v816 = vpop.f32.mrf.mxu0
      %v817 = vadd.f32 %v704, %v816
      %818 = vmatmul.f32.gmra.mxu0 %v293
      %v819 = vpop.f32.mrf.mxu0
      %v820 = vadd.f32 %v707, %v819
      %821 = vmatmul.f32.gmra.mxu0 %v297
      %v822 = vpop.f32.mrf.mxu0
      %v823 = vadd.f32 %v710, %v822
      %824 = vmatmul.f32.gmra.mxu0 %v301
      %v825 = vpop.f32.mrf.mxu0
      %v826 = vadd.f32 %v713, %v825
      %827 = vmatmul.f32.gmra.mxu0 %v305
      %v828 = vpop.f32.mrf.mxu0
      %v829 = vadd.f32 %v716, %v828
      %830 = vmatmul.f32.gmra.mxu0 %v309
      %v831 = vpop.f32.mrf.mxu0
      %v832 = vadd.f32 %v719, %v831
      %833 = vmatmul.f32.gmra.mxu0 %v313
      %v834 = vpop.f32.mrf.mxu0
      %v835 = vadd.f32 %v722, %v834
      %836 = vmatmul.f32.gmra.mxu0 %v317
      %v837 = vpop.f32.mrf.mxu0
      %v838 = vadd.f32 %v725, %v837
      %839 = vmatmul.f32.gmra.mxu0 %v321
      %v840 = vpop.f32.mrf.mxu0
      %v841 = vadd.f32 %v728, %v840
      %842 = vmatmul.f32.gmra.mxu0 %v325
      %v843 = vpop.f32.mrf.mxu0
      %v844 = vadd.f32 %v731, %v843
      %845 = vmatmul.f32.gmra.mxu0 %v329
      %v846 = vpop.f32.mrf.mxu0
      %v847 = vadd.f32 %v734, %v846
      %848 = vmatmul.f32.gmra.mxu0 %v333
      %v849 = vpop.f32.mrf.mxu0
      %v850 = vadd.f32 %v737, %v849
      %851 = vmatmul.f32.gmra.mxu0 %v337
      %v852 = vpop.f32.mrf.mxu0
      %v853 = vadd.f32 %v740, %v852
      %854 = vmatmul.f32.gmra.mxu0 %v341
      %v855 = vpop.f32.mrf.mxu0
      %v856 = vadd.f32 %v743, %v855
      %857 = vdwg.mxu0
      %v858 = vadd.f32 %v22, %v763
      %v859 = vadd.f32 %v23, %v766
      %v860 = vadd.f32 %v24, %v769
      %v861 = vadd.f32 %v25, %v772
      %v862 = vadd.f32 %v26, %v775
      %v863 = vadd.f32 %v27, %v778
      %v864 = vadd.f32 %v28, %v781
      %v865 = vadd.f32 %v29, %v784
      %v866 = vadd.f32 %v30, %v787
      %v867 = vadd.f32 %v31, %v790
      %v868 = vadd.f32 %v32, %v793
      %v869 = vadd.f32 %v33, %v796
      %v870 = vadd.f32 %v34, %v799
      %v871 = vadd.f32 %v35, %v802
      %v872 = vadd.f32 %v36, %v805
      %v873 = vadd.f32 %v37, %v808
      %v874 = vadd.f32 %v38, %v811
      %v875 = vadd.f32 %v39, %v814
      %v876 = vadd.f32 %v40, %v817
      %v877 = vadd.f32 %v41, %v820
      %v878 = vadd.f32 %v42, %v823
      %v879 = vadd.f32 %v43, %v826
      %v880 = vadd.f32 %v44, %v829
      %v881 = vadd.f32 %v45, %v832
      %v882 = vadd.f32 %v46, %v835
      %v883 = vadd.f32 %v47, %v838
      %v884 = vadd.f32 %v48, %v841
      %v885 = vadd.f32 %v49, %v844
      %v886 = vadd.f32 %v50, %v847
      %v887 = vadd.f32 %v51, %v850
      %v888 = vadd.f32 %v52, %v853
      %v889 = vadd.f32 %v53, %v856
      %vm890 = vcmask 261120
      %891 = vst.msk [vmem:[#allocation2] sm:$0xff] %vm890, %v858
      %892 = vst.msk [vmem:[#allocation2 + $0x8] sm:$0xff] %vm890, %v859
      %893 = vst.msk [vmem:[#allocation2 + $0x10] sm:$0xff] %vm890, %v860
      %894 = vst.msk [vmem:[#allocation2 + $0x18] sm:$0xff] %vm890, %v861
      %895 = vst.msk [vmem:[#allocation2 + $0x20] sm:$0xff] %vm890, %v862
      %896 = vst.msk [vmem:[#allocation2 + $0x28] sm:$0xff] %vm890, %v863
      %897 = vst.msk [vmem:[#allocation2 + $0x30] sm:$0xff] %vm890, %v864
      %898 = vst.msk [vmem:[#allocation2 + $0x38] sm:$0xff] %vm890, %v865
      %899 = vst.msk [vmem:[#allocation2 + $0x40] sm:$0xff] %vm890, %v866
      %900 = vst.msk [vmem:[#allocation2 + $0x48] sm:$0xff] %vm890, %v867
      %901 = vst.msk [vmem:[#allocation2 + $0x50] sm:$0xff] %vm890, %v868
      %902 = vst.msk [vmem:[#allocation2 + $0x58] sm:$0xff] %vm890, %v869
      %903 = vst.msk [vmem:[#allocation2 + $0x60] sm:$0xff] %vm890, %v870
      %904 = vst.msk [vmem:[#allocation2 + $0x68] sm:$0xff] %vm890, %v871
      %905 = vst.msk [vmem:[#allocation2 + $0x70] sm:$0xff] %vm890, %v872
      %906 = vst.msk [vmem:[#allocation2 + $0x78] sm:$0xff] %vm890, %v873
      %907 = vst.msk [vmem:[#allocation2 + $0x80] sm:$0xff] %vm890, %v874
      %908 = vst.msk [vmem:[#allocation2 + $0x88] sm:$0xff] %vm890, %v875
      %909 = vst.msk [vmem:[#allocation2 + $0x90] sm:$0xff] %vm890, %v876
      %910 = vst.msk [vmem:[#allocation2 + $0x98] sm:$0xff] %vm890, %v877
      %911 = vst.msk [vmem:[#allocation2 + $0xa0] sm:$0xff] %vm890, %v878
      %912 = vst.msk [vmem:[#allocation2 + $0xa8] sm:$0xff] %vm890, %v879
      %913 = vst.msk [vmem:[#allocation2 + $0xb0] sm:$0xff] %vm890, %v880
      %914 = vst.msk [vmem:[#allocation2 + $0xb8] sm:$0xff] %vm890, %v881
      %915 = vst.msk [vmem:[#allocation2 + $0xc0] sm:$0xff] %vm890, %v882
      %916 = vst.msk [vmem:[#allocation2 + $0xc8] sm:$0xff] %vm890, %v883
      %917 = vst.msk [vmem:[#allocation2 + $0xd0] sm:$0xff] %vm890, %v884
      %918 = vst.msk [vmem:[#allocation2 + $0xd8] sm:$0xff] %vm890, %v885
      %919 = vst.msk [vmem:[#allocation2 + $0xe0] sm:$0xff] %vm890, %v886
      %920 = vst.msk [vmem:[#allocation2 + $0xe8] sm:$0xff] %vm890, %v887
      %921 = vst.msk [vmem:[#allocation2 + $0xf0] sm:$0xff] %vm890, %v888
      %922 = vst.msk [vmem:[#allocation2 + $0xf8] sm:$0xff] %vm890, %v889
    $region21: #{svdpp_forward.1} parent=1 // pred_fallthru
      _
    %v923 = vld [vmem:[#allocation2] sm:$0xff]
    %v924 = vld [vmem:[#allocation2 + $0x8] sm:$0xff]
    %v925 = vld [vmem:[#allocation2 + $0x10] sm:$0xff]
    %v926 = vld [vmem:[#allocation2 + $0x18] sm:$0xff]
    %v927 = vld [vmem:[#allocation2 + $0x20] sm:$0xff]
    %v928 = vld [vmem:[#allocation2 + $0x28] sm:$0xff]
    %v929 = vld [vmem:[#allocation2 + $0x30] sm:$0xff]
    %v930 = vld [vmem:[#allocation2 + $0x38] sm:$0xff]
    %v931 = vld [vmem:[#allocation2 + $0x40] sm:$0xff]
    %v932 = vld [vmem:[#allocation2 + $0x48] sm:$0xff]
    %v933 = vld [vmem:[#allocation2 + $0x50] sm:$0xff]
    %v934 = vld [vmem:[#allocation2 + $0x58] sm:$0xff]
    %v935 = vld [vmem:[#allocation2 + $0x60] sm:$0xff]
    %v936 = vld [vmem:[#allocation2 + $0x68] sm:$0xff]
    %v937 = vld [vmem:[#allocation2 + $0x70] sm:$0xff]
    %v938 = vld [vmem:[#allocation2 + $0x78] sm:$0xff]
    %v939 = vld [vmem:[#allocation2 + $0x80] sm:$0xff]
    %v940 = vld [vmem:[#allocation2 + $0x88] sm:$0xff]
    %v941 = vld [vmem:[#allocation2 + $0x90] sm:$0xff]
    %v942 = vld [vmem:[#allocation2 + $0x98] sm:$0xff]
    %v943 = vld [vmem:[#allocation2 + $0xa0] sm:$0xff]
    %v944 = vld [vmem:[#allocation2 + $0xa8] sm:$0xff]
    %v945 = vld [vmem:[#allocation2 + $0xb0] sm:$0xff]
    %v946 = vld [vmem:[#allocation2 + $0xb8] sm:$0xff]
    %v947 = vld [vmem:[#allocation2 + $0xc0] sm:$0xff]
    %v948 = vld [vmem:[#allocation2 + $0xc8] sm:$0xff]
    %v949 = vld [vmem:[#allocation2 + $0xd0] sm:$0xff]
    %v950 = vld [vmem:[#allocation2 + $0xd8] sm:$0xff]
    %v951 = vld [vmem:[#allocation2 + $0xe0] sm:$0xff]
    %v952 = vld [vmem:[#allocation2 + $0xe8] sm:$0xff]
    %v953 = vld [vmem:[#allocation2 + $0xf0] sm:$0xff]
    %v954 = vld [vmem:[#allocation2 + $0xf8] sm:$0xff]
    %v955 = vld [vmem:[%s3] sm:$0xff]
    %v956 = vld [vmem:[%s3 + $0x8] sm:$0xff]
    %v957 = vld [vmem:[%s3 + $0x10] sm:$0xff]
    %v958 = vld [vmem:[%s3 + $0x18] sm:$0xff]
    %v959 = vld [vmem:[%s3 + $0x20] sm:$0xff]
    %v960 = vld [vmem:[%s3 + $0x28] sm:$0xff]
    %v961 = vld [vmem:[%s3 + $0x30] sm:$0xff]
    %v962 = vld [vmem:[%s3 + $0x38] sm:$0xff]
    %v963 = vld [vmem:[%s3 + $0x40] sm:$0xff]
    %v964 = vld [vmem:[%s3 + $0x48] sm:$0xff]
    %v965 = vld [vmem:[%s3 + $0x50] sm:$0xff]
    %v966 = vld [vmem:[%s3 + $0x58] sm:$0xff]
    %v967 = vld [vmem:[%s3 + $0x60] sm:$0xff]
    %v968 = vld [vmem:[%s3 + $0x68] sm:$0xff]
    %v969 = vld [vmem:[%s3 + $0x70] sm:$0xff]
    %v970 = vld [vmem:[%s3 + $0x78] sm:$0xff]
    %vm971 = vcmask 261120
    %v973 = vsel %vm971, %v923, 0
    %v976 = vsel %vm971, %v924, 0
    %v979 = vsel %vm971, %v925, 0
    %v982 = vsel %vm971, %v926, 0
    %v985 = vsel %vm971, %v927, 0
    %v988 = vsel %vm971, %v928, 0
    %v991 = vsel %vm971, %v929, 0
    %v994 = vsel %vm971, %v930, 0
    %v997 = vsel %vm971, %v931, 0
    %v1000 = vsel %vm971, %v932, 0
    %v1003 = vsel %vm971, %v933, 0
    %v1006 = vsel %vm971, %v934, 0
    %v1009 = vsel %vm971, %v935, 0
    %v1012 = vsel %vm971, %v936, 0
    %v1015 = vsel %vm971, %v937, 0
    %v1018 = vsel %vm971, %v938, 0
    %v1021 = vsel %vm971, %v939, 0
    %v1024 = vsel %vm971, %v940, 0
    %v1027 = vsel %vm971, %v941, 0
    %v1030 = vsel %vm971, %v942, 0
    %v1033 = vsel %vm971, %v943, 0
    %v1036 = vsel %vm971, %v944, 0
    %v1039 = vsel %vm971, %v945, 0
    %v1042 = vsel %vm971, %v946, 0
    %v1045 = vsel %vm971, %v947, 0
    %v1048 = vsel %vm971, %v948, 0
    %v1051 = vsel %vm971, %v949, 0
    %v1054 = vsel %vm971, %v950, 0
    %v1057 = vsel %vm971, %v951, 0
    %v1060 = vsel %vm971, %v952, 0
    %v1063 = vsel %vm971, %v953, 0
    %v1066 = vsel %vm971, %v954, 0
    %1068 = vmatpush.msra.mxu0 0.0
    %1069 = vmatpush.msra.mxu0 0.0
    %1070 = vmatpush.msra.mxu0 0.0
    %1071 = vmatpush.msra.mxu0 0.0
    %1072 = vmatpush.msra.mxu0 0.0
    %1073 = vmatpush.msra.mxu0 0.0
    %1074 = vmatpush.msra.mxu0 0.0
    %1075 = vmatpush.msra.mxu0 0.0
    %1076 = vmatpush.msra.mxu0 0.0
    %1077 = vmatpush.msra.mxu0 0.0
    %1078 = vmatpush.msra.mxu0 0.0
    %1079 = vmatpush.msra.mxu0 0.0
    %1080 = vmatpush.msra.mxu0 %v967
    %1081 = vmatpush.msra.mxu0 %v963
    %1082 = vmatpush.msra.mxu0 %v959
    %1083 = vmatpush.msra.mxu0 %v955
    %1084 = vmatmul.f32.gmra.mxu0 %v973
    %v1085 = vpop.f32.mrf.mxu0
    %v1086 = vadd.f32 0.0, %v1085
    %1087 = vmatmul.f32.gmra.mxu0 %v976
    %v1088 = vpop.f32.mrf.mxu0
    %v1089 = vadd.f32 0.0, %v1088
    %1090 = vmatmul.f32.gmra.mxu0 %v979
    %v1091 = vpop.f32.mrf.mxu0
    %v1092 = vadd.f32 0.0, %v1091
    %1093 = vmatmul.f32.gmra.mxu0 %v982
    %v1094 = vpop.f32.mrf.mxu0
    %v1095 = vadd.f32 0.0, %v1094
    %1096 = vmatmul.f32.gmra.mxu0 %v985
    %v1097 = vpop.f32.mrf.mxu0
    %v1098 = vadd.f32 0.0, %v1097
    %1099 = vmatmul.f32.gmra.mxu0 %v988
    %v1100 = vpop.f32.mrf.mxu0
    %v1101 = vadd.f32 0.0, %v1100
    %1102 = vmatmul.f32.gmra.mxu0 %v991
    %v1103 = vpop.f32.mrf.mxu0
    %v1104 = vadd.f32 0.0, %v1103
    %1105 = vmatmul.f32.gmra.mxu0 %v994
    %v1106 = vpop.f32.mrf.mxu0
    %v1107 = vadd.f32 0.0, %v1106
    %1108 = vmatmul.f32.gmra.mxu0 %v997
    %v1109 = vpop.f32.mrf.mxu0
    %v1110 = vadd.f32 0.0, %v1109
    %1111 = vmatmul.f32.gmra.mxu0 %v1000
    %v1112 = vpop.f32.mrf.mxu0
    %v1113 = vadd.f32 0.0, %v1112
    %1114 = vmatmul.f32.gmra.mxu0 %v1003
    %v1115 = vpop.f32.mrf.mxu0
    %v1116 = vadd.f32 0.0, %v1115
    %1117 = vmatmul.f32.gmra.mxu0 %v1006
    %v1118 = vpop.f32.mrf.mxu0
    %v1119 = vadd.f32 0.0, %v1118
    %1120 = vmatmul.f32.gmra.mxu0 %v1009
    %v1121 = vpop.f32.mrf.mxu0
    %v1122 = vadd.f32 0.0, %v1121
    %1123 = vmatmul.f32.gmra.mxu0 %v1012
    %v1124 = vpop.f32.mrf.mxu0
    %v1125 = vadd.f32 0.0, %v1124
    %1126 = vmatmul.f32.gmra.mxu0 %v1015
    %v1127 = vpop.f32.mrf.mxu0
    %v1128 = vadd.f32 0.0, %v1127
    %1129 = vmatmul.f32.gmra.mxu0 %v1018
    %v1130 = vpop.f32.mrf.mxu0
    %v1131 = vadd.f32 0.0, %v1130
    %1132 = vmatmul.f32.gmra.mxu0 %v1021
    %v1133 = vpop.f32.mrf.mxu0
    %v1134 = vadd.f32 0.0, %v1133
    %1135 = vmatmul.f32.gmra.mxu0 %v1024
    %v1136 = vpop.f32.mrf.mxu0
    %v1137 = vadd.f32 0.0, %v1136
    %1138 = vmatmul.f32.gmra.mxu0 %v1027
    %v1139 = vpop.f32.mrf.mxu0
    %v1140 = vadd.f32 0.0, %v1139
    %1141 = vmatmul.f32.gmra.mxu0 %v1030
    %v1142 = vpop.f32.mrf.mxu0
    %v1143 = vadd.f32 0.0, %v1142
    %1144 = vmatmul.f32.gmra.mxu0 %v1033
    %v1145 = vpop.f32.mrf.mxu0
    %v1146 = vadd.f32 0.0, %v1145
    %1147 = vmatmul.f32.gmra.mxu0 %v1036
    %v1148 = vpop.f32.mrf.mxu0
    %v1149 = vadd.f32 0.0, %v1148
    %1150 = vmatmul.f32.gmra.mxu0 %v1039
    %v1151 = vpop.f32.mrf.mxu0
    %v1152 = vadd.f32 0.0, %v1151
    %1153 = vmatmul.f32.gmra.mxu0 %v1042
    %v1154 = vpop.f32.mrf.mxu0
    %v1155 = vadd.f32 0.0, %v1154
    %1156 = vmatmul.f32.gmra.mxu0 %v1045
    %v1157 = vpop.f32.mrf.mxu0
    %v1158 = vadd.f32 0.0, %v1157
    %1159 = vmatmul.f32.gmra.mxu0 %v1048
    %v1160 = vpop.f32.mrf.mxu0
    %v1161 = vadd.f32 0.0, %v1160
    %1162 = vmatmul.f32.gmra.mxu0 %v1051
    %v1163 = vpop.f32.mrf.mxu0
    %v1164 = vadd.f32 0.0, %v1163
    %1165 = vmatmul.f32.gmra.mxu0 %v1054
    %v1166 = vpop.f32.mrf.mxu0
    %v1167 = vadd.f32 0.0, %v1166
    %1168 = vmatmul.f32.gmra.mxu0 %v1057
    %v1169 = vpop.f32.mrf.mxu0
    %v1170 = vadd.f32 0.0, %v1169
    %1171 = vmatmul.f32.gmra.mxu0 %v1060
    %v1172 = vpop.f32.mrf.mxu0
    %v1173 = vadd.f32 0.0, %v1172
    %1174 = vmatmul.f32.gmra.mxu0 %v1063
    %v1175 = vpop.f32.mrf.mxu0
    %v1176 = vadd.f32 0.0, %v1175
    %1177 = vmatmul.f32.gmra.mxu0 %v1066
    %v1178 = vpop.f32.mrf.mxu0
    %v1179 = vadd.f32 0.0, %v1178
    %1180 = vdwg.mxu0
    %1181 = vmatpush.msra.mxu0 0.0
    %1182 = vmatpush.msra.mxu0 0.0
    %1183 = vmatpush.msra.mxu0 0.0
    %1184 = vmatpush.msra.mxu0 0.0
    %1185 = vmatpush.msra.mxu0 0.0
    %1186 = vmatpush.msra.mxu0 0.0
    %1187 = vmatpush.msra.mxu0 0.0
    %1188 = vmatpush.msra.mxu0 0.0
    %1189 = vmatpush.msra.mxu0 0.0
    %1190 = vmatpush.msra.mxu0 0.0
    %1191 = vmatpush.msra.mxu0 0.0
    %1192 = vmatpush.msra.mxu0 0.0
    %1193 = vmatpush.msra.mxu0 %v968
    %1194 = vmatpush.msra.mxu0 %v964
    %1195 = vmatpush.msra.mxu0 %v960
    %1196 = vmatpush.msra.mxu0 %v956
    %1197 = vmatmul.f32.gmra.mxu0 %v973
    %v1198 = vpop.f32.mrf.mxu0
    %v1199 = vadd.f32 0.0, %v1198
    %1200 = vmatmul.f32.gmra.mxu0 %v976
    %v1201 = vpop.f32.mrf.mxu0
    %v1202 = vadd.f32 0.0, %v1201
    %1203 = vmatmul.f32.gmra.mxu0 %v979
    %v1204 = vpop.f32.mrf.mxu0
    %v1205 = vadd.f32 0.0, %v1204
    %1206 = vmatmul.f32.gmra.mxu0 %v982
    %v1207 = vpop.f32.mrf.mxu0
    %v1208 = vadd.f32 0.0, %v1207
    %1209 = vmatmul.f32.gmra.mxu0 %v985
    %v1210 = vpop.f32.mrf.mxu0
    %v1211 = vadd.f32 0.0, %v1210
    %1212 = vmatmul.f32.gmra.mxu0 %v988
    %v1213 = vpop.f32.mrf.mxu0
    %v1214 = vadd.f32 0.0, %v1213
    %1215 = vmatmul.f32.gmra.mxu0 %v991
    %v1216 = vpop.f32.mrf.mxu0
    %v1217 = vadd.f32 0.0, %v1216
    %1218 = vmatmul.f32.gmra.mxu0 %v994
    %v1219 = vpop.f32.mrf.mxu0
    %v1220 = vadd.f32 0.0, %v1219
    %1221 = vmatmul.f32.gmra.mxu0 %v997
    %v1222 = vpop.f32.mrf.mxu0
    %v1223 = vadd.f32 0.0, %v1222
    %1224 = vmatmul.f32.gmra.mxu0 %v1000
    %v1225 = vpop.f32.mrf.mxu0
    %v1226 = vadd.f32 0.0, %v1225
    %1227 = vmatmul.f32.gmra.mxu0 %v1003
    %v1228 = vpop.f32.mrf.mxu0
    %v1229 = vadd.f32 0.0, %v1228
    %1230 = vmatmul.f32.gmra.mxu0 %v1006
    %v1231 = vpop.f32.mrf.mxu0
    %v1232 = vadd.f32 0.0, %v1231
    %1233 = vmatmul.f32.gmra.mxu0 %v1009
    %v1234 = vpop.f32.mrf.mxu0
    %v1235 = vadd.f32 0.0, %v1234
    %1236 = vmatmul.f32.gmra.mxu0 %v1012
    %v1237 = vpop.f32.mrf.mxu0
    %v1238 = vadd.f32 0.0, %v1237
    %1239 = vmatmul.f32.gmra.mxu0 %v1015
    %v1240 = vpop.f32.mrf.mxu0
    %v1241 = vadd.f32 0.0, %v1240
    %1242 = vmatmul.f32.gmra.mxu0 %v1018
    %v1243 = vpop.f32.mrf.mxu0
    %v1244 = vadd.f32 0.0, %v1243
    %1245 = vmatmul.f32.gmra.mxu0 %v1021
    %v1246 = vpop.f32.mrf.mxu0
    %v1247 = vadd.f32 0.0, %v1246
    %1248 = vmatmul.f32.gmra.mxu0 %v1024
    %v1249 = vpop.f32.mrf.mxu0
    %v1250 = vadd.f32 0.0, %v1249
    %1251 = vmatmul.f32.gmra.mxu0 %v1027
    %v1252 = vpop.f32.mrf.mxu0
    %v1253 = vadd.f32 0.0, %v1252
    %1254 = vmatmul.f32.gmra.mxu0 %v1030
    %v1255 = vpop.f32.mrf.mxu0
    %v1256 = vadd.f32 0.0, %v1255
    %1257 = vmatmul.f32.gmra.mxu0 %v1033
    %v1258 = vpop.f32.mrf.mxu0
    %v1259 = vadd.f32 0.0, %v1258
    %1260 = vmatmul.f32.gmra.mxu0 %v1036
    %v1261 = vpop.f32.mrf.mxu0
    %v1262 = vadd.f32 0.0, %v1261
    %1263 = vmatmul.f32.gmra.mxu0 %v1039
    %v1264 = vpop.f32.mrf.mxu0
    %v1265 = vadd.f32 0.0, %v1264
    %1266 = vmatmul.f32.gmra.mxu0 %v1042
    %v1267 = vpop.f32.mrf.mxu0
    %v1268 = vadd.f32 0.0, %v1267
    %1269 = vmatmul.f32.gmra.mxu0 %v1045
    %v1270 = vpop.f32.mrf.mxu0
    %v1271 = vadd.f32 0.0, %v1270
    %1272 = vmatmul.f32.gmra.mxu0 %v1048
    %v1273 = vpop.f32.mrf.mxu0
    %v1274 = vadd.f32 0.0, %v1273
    %1275 = vmatmul.f32.gmra.mxu0 %v1051
    %v1276 = vpop.f32.mrf.mxu0
    %v1277 = vadd.f32 0.0, %v1276
    %1278 = vmatmul.f32.gmra.mxu0 %v1054
    %v1279 = vpop.f32.mrf.mxu0
    %v1280 = vadd.f32 0.0, %v1279
    %1281 = vmatmul.f32.gmra.mxu0 %v1057
    %v1282 = vpop.f32.mrf.mxu0
    %v1283 = vadd.f32 0.0, %v1282
    %1284 = vmatmul.f32.gmra.mxu0 %v1060
    %v1285 = vpop.f32.mrf.mxu0
    %v1286 = vadd.f32 0.0, %v1285
    %1287 = vmatmul.f32.gmra.mxu0 %v1063
    %v1288 = vpop.f32.mrf.mxu0
    %v1289 = vadd.f32 0.0, %v1288
    %1290 = vmatmul.f32.gmra.mxu0 %v1066
    %v1291 = vpop.f32.mrf.mxu0
    %v1292 = vadd.f32 0.0, %v1291
    %1293 = vdwg.mxu0
    %1294 = vmatpush.msra.mxu0 0.0
    %1295 = vmatpush.msra.mxu0 0.0
    %1296 = vmatpush.msra.mxu0 0.0
    %1297 = vmatpush.msra.mxu0 0.0
    %1298 = vmatpush.msra.mxu0 0.0
    %1299 = vmatpush.msra.mxu0 0.0
    %1300 = vmatpush.msra.mxu0 0.0
    %1301 = vmatpush.msra.mxu0 0.0
    %1302 = vmatpush.msra.mxu0 0.0
    %1303 = vmatpush.msra.mxu0 0.0
    %1304 = vmatpush.msra.mxu0 0.0
    %1305 = vmatpush.msra.mxu0 0.0
    %1306 = vmatpush.msra.mxu0 %v969
    %1307 = vmatpush.msra.mxu0 %v965
    %1308 = vmatpush.msra.mxu0 %v961
    %1309 = vmatpush.msra.mxu0 %v957
    %1310 = vmatmul.f32.gmra.mxu0 %v973
    %v1311 = vpop.f32.mrf.mxu0
    %v1312 = vadd.f32 0.0, %v1311
    %1313 = vmatmul.f32.gmra.mxu0 %v976
    %v1314 = vpop.f32.mrf.mxu0
    %v1315 = vadd.f32 0.0, %v1314
    %1316 = vmatmul.f32.gmra.mxu0 %v979
    %v1317 = vpop.f32.mrf.mxu0
    %v1318 = vadd.f32 0.0, %v1317
    %1319 = vmatmul.f32.gmra.mxu0 %v982
    %v1320 = vpop.f32.mrf.mxu0
    %v1321 = vadd.f32 0.0, %v1320
    %1322 = vmatmul.f32.gmra.mxu0 %v985
    %v1323 = vpop.f32.mrf.mxu0
    %v1324 = vadd.f32 0.0, %v1323
    %1325 = vmatmul.f32.gmra.mxu0 %v988
    %v1326 = vpop.f32.mrf.mxu0
    %v1327 = vadd.f32 0.0, %v1326
    %1328 = vmatmul.f32.gmra.mxu0 %v991
    %v1329 = vpop.f32.mrf.mxu0
    %v1330 = vadd.f32 0.0, %v1329
    %1331 = vmatmul.f32.gmra.mxu0 %v994
    %v1332 = vpop.f32.mrf.mxu0
    %v1333 = vadd.f32 0.0, %v1332
    %1334 = vmatmul.f32.gmra.mxu0 %v997
    %v1335 = vpop.f32.mrf.mxu0
    %v1336 = vadd.f32 0.0, %v1335
    %1337 = vmatmul.f32.gmra.mxu0 %v1000
    %v1338 = vpop.f32.mrf.mxu0
    %v1339 = vadd.f32 0.0, %v1338
    %1340 = vmatmul.f32.gmra.mxu0 %v1003
    %v1341 = vpop.f32.mrf.mxu0
    %v1342 = vadd.f32 0.0, %v1341
    %1343 = vmatmul.f32.gmra.mxu0 %v1006
    %v1344 = vpop.f32.mrf.mxu0
    %v1345 = vadd.f32 0.0, %v1344
    %1346 = vmatmul.f32.gmra.mxu0 %v1009
    %v1347 = vpop.f32.mrf.mxu0
    %v1348 = vadd.f32 0.0, %v1347
    %1349 = vmatmul.f32.gmra.mxu0 %v1012
    %v1350 = vpop.f32.mrf.mxu0
    %v1351 = vadd.f32 0.0, %v1350
    %1352 = vmatmul.f32.gmra.mxu0 %v1015
    %v1353 = vpop.f32.mrf.mxu0
    %v1354 = vadd.f32 0.0, %v1353
    %1355 = vmatmul.f32.gmra.mxu0 %v1018
    %v1356 = vpop.f32.mrf.mxu0
    %v1357 = vadd.f32 0.0, %v1356
    %1358 = vmatmul.f32.gmra.mxu0 %v1021
    %v1359 = vpop.f32.mrf.mxu0
    %v1360 = vadd.f32 0.0, %v1359
    %1361 = vmatmul.f32.gmra.mxu0 %v1024
    %v1362 = vpop.f32.mrf.mxu0
    %v1363 = vadd.f32 0.0, %v1362
    %1364 = vmatmul.f32.gmra.mxu0 %v1027
    %v1365 = vpop.f32.mrf.mxu0
    %v1366 = vadd.f32 0.0, %v1365
    %1367 = vmatmul.f32.gmra.mxu0 %v1030
    %v1368 = vpop.f32.mrf.mxu0
    %v1369 = vadd.f32 0.0, %v1368
    %1370 = vmatmul.f32.gmra.mxu0 %v1033
    %v1371 = vpop.f32.mrf.mxu0
    %v1372 = vadd.f32 0.0, %v1371
    %1373 = vmatmul.f32.gmra.mxu0 %v1036
    %v1374 = vpop.f32.mrf.mxu0
    %v1375 = vadd.f32 0.0, %v1374
    %1376 = vmatmul.f32.gmra.mxu0 %v1039
    %v1377 = vpop.f32.mrf.mxu0
    %v1378 = vadd.f32 0.0, %v1377
    %1379 = vmatmul.f32.gmra.mxu0 %v1042
    %v1380 = vpop.f32.mrf.mxu0
    %v1381 = vadd.f32 0.0, %v1380
    %1382 = vmatmul.f32.gmra.mxu0 %v1045
    %v1383 = vpop.f32.mrf.mxu0
    %v1384 = vadd.f32 0.0, %v1383
    %1385 = vmatmul.f32.gmra.mxu0 %v1048
    %v1386 = vpop.f32.mrf.mxu0
    %v1387 = vadd.f32 0.0, %v1386
    %1388 = vmatmul.f32.gmra.mxu0 %v1051
    %v1389 = vpop.f32.mrf.mxu0
    %v1390 = vadd.f32 0.0, %v1389
    %1391 = vmatmul.f32.gmra.mxu0 %v1054
    %v1392 = vpop.f32.mrf.mxu0
    %v1393 = vadd.f32 0.0, %v1392
    %1394 = vmatmul.f32.gmra.mxu0 %v1057
    %v1395 = vpop.f32.mrf.mxu0
    %v1396 = vadd.f32 0.0, %v1395
    %1397 = vmatmul.f32.gmra.mxu0 %v1060
    %v1398 = vpop.f32.mrf.mxu0
    %v1399 = vadd.f32 0.0, %v1398
    %1400 = vmatmul.f32.gmra.mxu0 %v1063
    %v1401 = vpop.f32.mrf.mxu0
    %v1402 = vadd.f32 0.0, %v1401
    %1403 = vmatmul.f32.gmra.mxu0 %v1066
    %v1404 = vpop.f32.mrf.mxu0
    %v1405 = vadd.f32 0.0, %v1404
    %1406 = vdwg.mxu0
    %1407 = vmatpush.msra.mxu0 0.0
    %1408 = vmatpush.msra.mxu0 0.0
    %1409 = vmatpush.msra.mxu0 0.0
    %1410 = vmatpush.msra.mxu0 0.0
    %1411 = vmatpush.msra.mxu0 0.0
    %1412 = vmatpush.msra.mxu0 0.0
    %1413 = vmatpush.msra.mxu0 0.0
    %1414 = vmatpush.msra.mxu0 0.0
    %1415 = vmatpush.msra.mxu0 0.0
    %1416 = vmatpush.msra.mxu0 0.0
    %1417 = vmatpush.msra.mxu0 0.0
    %1418 = vmatpush.msra.mxu0 0.0
    %1419 = vmatpush.msra.mxu0 %v970
    %1420 = vmatpush.msra.mxu0 %v966
    %1421 = vmatpush.msra.mxu0 %v962
    %1422 = vmatpush.msra.mxu0 %v958
    %1423 = vmatmul.f32.gmra.mxu0 %v973
    %v1424 = vpop.f32.mrf.mxu0
    %v1425 = vadd.f32 0.0, %v1424
    %1426 = vmatmul.f32.gmra.mxu0 %v976
    %v1427 = vpop.f32.mrf.mxu0
    %v1428 = vadd.f32 0.0, %v1427
    %1429 = vmatmul.f32.gmra.mxu0 %v979
    %v1430 = vpop.f32.mrf.mxu0
    %v1431 = vadd.f32 0.0, %v1430
    %1432 = vmatmul.f32.gmra.mxu0 %v982
    %v1433 = vpop.f32.mrf.mxu0
    %v1434 = vadd.f32 0.0, %v1433
    %1435 = vmatmul.f32.gmra.mxu0 %v985
    %v1436 = vpop.f32.mrf.mxu0
    %v1437 = vadd.f32 0.0, %v1436
    %1438 = vmatmul.f32.gmra.mxu0 %v988
    %v1439 = vpop.f32.mrf.mxu0
    %v1440 = vadd.f32 0.0, %v1439
    %1441 = vmatmul.f32.gmra.mxu0 %v991
    %v1442 = vpop.f32.mrf.mxu0
    %v1443 = vadd.f32 0.0, %v1442
    %1444 = vmatmul.f32.gmra.mxu0 %v994
    %v1445 = vpop.f32.mrf.mxu0
    %v1446 = vadd.f32 0.0, %v1445
    %1447 = vmatmul.f32.gmra.mxu0 %v997
    %v1448 = vpop.f32.mrf.mxu0
    %v1449 = vadd.f32 0.0, %v1448
    %1450 = vmatmul.f32.gmra.mxu0 %v1000
    %v1451 = vpop.f32.mrf.mxu0
    %v1452 = vadd.f32 0.0, %v1451
    %1453 = vmatmul.f32.gmra.mxu0 %v1003
    %v1454 = vpop.f32.mrf.mxu0
    %v1455 = vadd.f32 0.0, %v1454
    %1456 = vmatmul.f32.gmra.mxu0 %v1006
    %v1457 = vpop.f32.mrf.mxu0
    %v1458 = vadd.f32 0.0, %v1457
    %1459 = vmatmul.f32.gmra.mxu0 %v1009
    %v1460 = vpop.f32.mrf.mxu0
    %v1461 = vadd.f32 0.0, %v1460
    %1462 = vmatmul.f32.gmra.mxu0 %v1012
    %v1463 = vpop.f32.mrf.mxu0
    %v1464 = vadd.f32 0.0, %v1463
    %1465 = vmatmul.f32.gmra.mxu0 %v1015
    %v1466 = vpop.f32.mrf.mxu0
    %v1467 = vadd.f32 0.0, %v1466
    %1468 = vmatmul.f32.gmra.mxu0 %v1018
    %v1469 = vpop.f32.mrf.mxu0
    %v1470 = vadd.f32 0.0, %v1469
    %1471 = vmatmul.f32.gmra.mxu0 %v1021
    %v1472 = vpop.f32.mrf.mxu0
    %v1473 = vadd.f32 0.0, %v1472
    %1474 = vmatmul.f32.gmra.mxu0 %v1024
    %v1475 = vpop.f32.mrf.mxu0
    %v1476 = vadd.f32 0.0, %v1475
    %1477 = vmatmul.f32.gmra.mxu0 %v1027
    %v1478 = vpop.f32.mrf.mxu0
    %v1479 = vadd.f32 0.0, %v1478
    %1480 = vmatmul.f32.gmra.mxu0 %v1030
    %v1481 = vpop.f32.mrf.mxu0
    %v1482 = vadd.f32 0.0, %v1481
    %1483 = vmatmul.f32.gmra.mxu0 %v1033
    %v1484 = vpop.f32.mrf.mxu0
    %v1485 = vadd.f32 0.0, %v1484
    %1486 = vmatmul.f32.gmra.mxu0 %v1036
    %v1487 = vpop.f32.mrf.mxu0
    %v1488 = vadd.f32 0.0, %v1487
    %1489 = vmatmul.f32.gmra.mxu0 %v1039
    %v1490 = vpop.f32.mrf.mxu0
    %v1491 = vadd.f32 0.0, %v1490
    %1492 = vmatmul.f32.gmra.mxu0 %v1042
    %v1493 = vpop.f32.mrf.mxu0
    %v1494 = vadd.f32 0.0, %v1493
    %1495 = vmatmul.f32.gmra.mxu0 %v1045
    %v1496 = vpop.f32.mrf.mxu0
    %v1497 = vadd.f32 0.0, %v1496
    %1498 = vmatmul.f32.gmra.mxu0 %v1048
    %v1499 = vpop.f32.mrf.mxu0
    %v1500 = vadd.f32 0.0, %v1499
    %1501 = vmatmul.f32.gmra.mxu0 %v1051
    %v1502 = vpop.f32.mrf.mxu0
    %v1503 = vadd.f32 0.0, %v1502
    %1504 = vmatmul.f32.gmra.mxu0 %v1054
    %v1505 = vpop.f32.mrf.mxu0
    %v1506 = vadd.f32 0.0, %v1505
    %1507 = vmatmul.f32.gmra.mxu0 %v1057
    %v1508 = vpop.f32.mrf.mxu0
    %v1509 = vadd.f32 0.0, %v1508
    %1510 = vmatmul.f32.gmra.mxu0 %v1060
    %v1511 = vpop.f32.mrf.mxu0
    %v1512 = vadd.f32 0.0, %v1511
    %1513 = vmatmul.f32.gmra.mxu0 %v1063
    %v1514 = vpop.f32.mrf.mxu0
    %v1515 = vadd.f32 0.0, %v1514
    %1516 = vmatmul.f32.gmra.mxu0 %v1066
    %v1517 = vpop.f32.mrf.mxu0
    %v1518 = vadd.f32 0.0, %v1517
    %1519 = vdwg.mxu0
    %1520 = vst [vmem:[#allocation3] sm:$0xff] %v1086
    %1521 = vst [vmem:[#allocation3 + $0x8] sm:$0xff] %v1199
    %1522 = vst [vmem:[#allocation3 + $0x10] sm:$0xff] %v1312
    %1523 = vst [vmem:[#allocation3 + $0x18] sm:$0xff] %v1425
    %1524 = vst [vmem:[#allocation3 + $0x20] sm:$0xff] %v1089
    %1525 = vst [vmem:[#allocation3 + $0x28] sm:$0xff] %v1202
    %1526 = vst [vmem:[#allocation3 + $0x30] sm:$0xff] %v1315
    %1527 = vst [vmem:[#allocation3 + $0x38] sm:$0xff] %v1428
    %1528 = vst [vmem:[#allocation3 + $0x40] sm:$0xff] %v1092
    %1529 = vst [vmem:[#allocation3 + $0x48] sm:$0xff] %v1205
    %1530 = vst [vmem:[#allocation3 + $0x50] sm:$0xff] %v1318
    %1531 = vst [vmem:[#allocation3 + $0x58] sm:$0xff] %v1431
    %1532 = vst [vmem:[#allocation3 + $0x60] sm:$0xff] %v1095
    %1533 = vst [vmem:[#allocation3 + $0x68] sm:$0xff] %v1208
    %1534 = vst [vmem:[#allocation3 + $0x70] sm:$0xff] %v1321
    %1535 = vst [vmem:[#allocation3 + $0x78] sm:$0xff] %v1434
    %1536 = vst [vmem:[#allocation3 + $0x80] sm:$0xff] %v1098
    %1537 = vst [vmem:[#allocation3 + $0x88] sm:$0xff] %v1211
    %1538 = vst [vmem:[#allocation3 + $0x90] sm:$0xff] %v1324
    %1539 = vst [vmem:[#allocation3 + $0x98] sm:$0xff] %v1437
    %1540 = vst [vmem:[#allocation3 + $0xa0] sm:$0xff] %v1101
    %1541 = vst [vmem:[#allocation3 + $0xa8] sm:$0xff] %v1214
    %1542 = vst [vmem:[#allocation3 + $0xb0] sm:$0xff] %v1327
    %1543 = vst [vmem:[#allocation3 + $0xb8] sm:$0xff] %v1440
    %1544 = vst [vmem:[#allocation3 + $0xc0] sm:$0xff] %v1104
    %1545 = vst [vmem:[#allocation3 + $0xc8] sm:$0xff] %v1217
    %1546 = vst [vmem:[#allocation3 + $0xd0] sm:$0xff] %v1330
    %1547 = vst [vmem:[#allocation3 + $0xd8] sm:$0xff] %v1443
    %1548 = vst [vmem:[#allocation3 + $0xe0] sm:$0xff] %v1107
    %1549 = vst [vmem:[#allocation3 + $0xe8] sm:$0xff] %v1220
    %1550 = vst [vmem:[#allocation3 + $0xf0] sm:$0xff] %v1333
    %1551 = vst [vmem:[#allocation3 + $0xf8] sm:$0xff] %v1446
    %1552 = vst [vmem:[#allocation3 + $0x100] sm:$0xff] %v1110
    %1553 = vst [vmem:[#allocation3 + $0x108] sm:$0xff] %v1223
    %1554 = vst [vmem:[#allocation3 + $0x110] sm:$0xff] %v1336
    %1555 = vst [vmem:[#allocation3 + $0x118] sm:$0xff] %v1449
    %1556 = vst [vmem:[#allocation3 + $0x120] sm:$0xff] %v1113
    %1557 = vst [vmem:[#allocation3 + $0x128] sm:$0xff] %v1226
    %1558 = vst [vmem:[#allocation3 + $0x130] sm:$0xff] %v1339
    %1559 = vst [vmem:[#allocation3 + $0x138] sm:$0xff] %v1452
    %1560 = vst [vmem:[#allocation3 + $0x140] sm:$0xff] %v1116
    %1561 = vst [vmem:[#allocation3 + $0x148] sm:$0xff] %v1229
    %1562 = vst [vmem:[#allocation3 + $0x150] sm:$0xff] %v1342
    %1563 = vst [vmem:[#allocation3 + $0x158] sm:$0xff] %v1455
    %1564 = vst [vmem:[#allocation3 + $0x160] sm:$0xff] %v1119
    %1565 = vst [vmem:[#allocation3 + $0x168] sm:$0xff] %v1232
    %1566 = vst [vmem:[#allocation3 + $0x170] sm:$0xff] %v1345
    %1567 = vst [vmem:[#allocation3 + $0x178] sm:$0xff] %v1458
    %1568 = vst [vmem:[#allocation3 + $0x180] sm:$0xff] %v1122
    %1569 = vst [vmem:[#allocation3 + $0x188] sm:$0xff] %v1235
    %1570 = vst [vmem:[#allocation3 + $0x190] sm:$0xff] %v1348
    %1571 = vst [vmem:[#allocation3 + $0x198] sm:$0xff] %v1461
    %1572 = vst [vmem:[#allocation3 + $0x1a0] sm:$0xff] %v1125
    %1573 = vst [vmem:[#allocation3 + $0x1a8] sm:$0xff] %v1238
    %1574 = vst [vmem:[#allocation3 + $0x1b0] sm:$0xff] %v1351
    %1575 = vst [vmem:[#allocation3 + $0x1b8] sm:$0xff] %v1464
    %1576 = vst [vmem:[#allocation3 + $0x1c0] sm:$0xff] %v1128
    %1577 = vst [vmem:[#allocation3 + $0x1c8] sm:$0xff] %v1241
    %1578 = vst [vmem:[#allocation3 + $0x1d0] sm:$0xff] %v1354
    %1579 = vst [vmem:[#allocation3 + $0x1d8] sm:$0xff] %v1467
    %1580 = vst [vmem:[#allocation3 + $0x1e0] sm:$0xff] %v1131
    %1581 = vst [vmem:[#allocation3 + $0x1e8] sm:$0xff] %v1244
    %1582 = vst [vmem:[#allocation3 + $0x1f0] sm:$0xff] %v1357
    %1583 = vst [vmem:[#allocation3 + $0x1f8] sm:$0xff] %v1470
    %1584 = vst [vmem:[#allocation3 + $0x200] sm:$0xff] %v1134
    %1585 = vst [vmem:[#allocation3 + $0x208] sm:$0xff] %v1247
    %1586 = vst [vmem:[#allocation3 + $0x210] sm:$0xff] %v1360
    %1587 = vst [vmem:[#allocation3 + $0x218] sm:$0xff] %v1473
    %1588 = vst [vmem:[#allocation3 + $0x220] sm:$0xff] %v1137
    %1589 = vst [vmem:[#allocation3 + $0x228] sm:$0xff] %v1250
    %1590 = vst [vmem:[#allocation3 + $0x230] sm:$0xff] %v1363
    %1591 = vst [vmem:[#allocation3 + $0x238] sm:$0xff] %v1476
    %1592 = vst [vmem:[#allocation3 + $0x240] sm:$0xff] %v1140
    %1593 = vst [vmem:[#allocation3 + $0x248] sm:$0xff] %v1253
    %1594 = vst [vmem:[#allocation3 + $0x250] sm:$0xff] %v1366
    %1595 = vst [vmem:[#allocation3 + $0x258] sm:$0xff] %v1479
    %1596 = vst [vmem:[#allocation3 + $0x260] sm:$0xff] %v1143
    %1597 = vst [vmem:[#allocation3 + $0x268] sm:$0xff] %v1256
    %1598 = vst [vmem:[#allocation3 + $0x270] sm:$0xff] %v1369
    %1599 = vst [vmem:[#allocation3 + $0x278] sm:$0xff] %v1482
    %1600 = vst [vmem:[#allocation3 + $0x280] sm:$0xff] %v1146
    %1601 = vst [vmem:[#allocation3 + $0x288] sm:$0xff] %v1259
    %1602 = vst [vmem:[#allocation3 + $0x290] sm:$0xff] %v1372
    %1603 = vst [vmem:[#allocation3 + $0x298] sm:$0xff] %v1485
    %1604 = vst [vmem:[#allocation3 + $0x2a0] sm:$0xff] %v1149
    %1605 = vst [vmem:[#allocation3 + $0x2a8] sm:$0xff] %v1262
    %1606 = vst [vmem:[#allocation3 + $0x2b0] sm:$0xff] %v1375
    %1607 = vst [vmem:[#allocation3 + $0x2b8] sm:$0xff] %v1488
    %1608 = vst [vmem:[#allocation3 + $0x2c0] sm:$0xff] %v1152
    %1609 = vst [vmem:[#allocation3 + $0x2c8] sm:$0xff] %v1265
    %1610 = vst [vmem:[#allocation3 + $0x2d0] sm:$0xff] %v1378
    %1611 = vst [vmem:[#allocation3 + $0x2d8] sm:$0xff] %v1491
    %1612 = vst [vmem:[#allocation3 + $0x2e0] sm:$0xff] %v1155
    %1613 = vst [vmem:[#allocation3 + $0x2e8] sm:$0xff] %v1268
    %1614 = vst [vmem:[#allocation3 + $0x2f0] sm:$0xff] %v1381
    %1615 = vst [vmem:[#allocation3 + $0x2f8] sm:$0xff] %v1494
    %1616 = vst [vmem:[#allocation3 + $0x300] sm:$0xff] %v1158
    %1617 = vst [vmem:[#allocation3 + $0x308] sm:$0xff] %v1271
    %1618 = vst [vmem:[#allocation3 + $0x310] sm:$0xff] %v1384
    %1619 = vst [vmem:[#allocation3 + $0x318] sm:$0xff] %v1497
    %1620 = vst [vmem:[#allocation3 + $0x320] sm:$0xff] %v1161
    %1621 = vst [vmem:[#allocation3 + $0x328] sm:$0xff] %v1274
    %1622 = vst [vmem:[#allocation3 + $0x330] sm:$0xff] %v1387
    %1623 = vst [vmem:[#allocation3 + $0x338] sm:$0xff] %v1500
    %1624 = vst [vmem:[#allocation3 + $0x340] sm:$0xff] %v1164
    %1625 = vst [vmem:[#allocation3 + $0x348] sm:$0xff] %v1277
    %1626 = vst [vmem:[#allocation3 + $0x350] sm:$0xff] %v1390
    %1627 = vst [vmem:[#allocation3 + $0x358] sm:$0xff] %v1503
    %1628 = vst [vmem:[#allocation3 + $0x360] sm:$0xff] %v1167
    %1629 = vst [vmem:[#allocation3 + $0x368] sm:$0xff] %v1280
    %1630 = vst [vmem:[#allocation3 + $0x370] sm:$0xff] %v1393
    %1631 = vst [vmem:[#allocation3 + $0x378] sm:$0xff] %v1506
    %1632 = vst [vmem:[#allocation3 + $0x380] sm:$0xff] %v1170
    %1633 = vst [vmem:[#allocation3 + $0x388] sm:$0xff] %v1283
    %1634 = vst [vmem:[#allocation3 + $0x390] sm:$0xff] %v1396
    %1635 = vst [vmem:[#allocation3 + $0x398] sm:$0xff] %v1509
    %1636 = vst [vmem:[#allocation3 + $0x3a0] sm:$0xff] %v1173
    %1637 = vst [vmem:[#allocation3 + $0x3a8] sm:$0xff] %v1286
    %1638 = vst [vmem:[#allocation3 + $0x3b0] sm:$0xff] %v1399
    %1639 = vst [vmem:[#allocation3 + $0x3b8] sm:$0xff] %v1512
    %1640 = vst [vmem:[#allocation3 + $0x3c0] sm:$0xff] %v1176
    %1641 = vst [vmem:[#allocation3 + $0x3c8] sm:$0xff] %v1289
    %1642 = vst [vmem:[#allocation3 + $0x3d0] sm:$0xff] %v1402
    %1643 = vst [vmem:[#allocation3 + $0x3d8] sm:$0xff] %v1515
    %1644 = vst [vmem:[#allocation3 + $0x3e0] sm:$0xff] %v1179
    %1645 = vst [vmem:[#allocation3 + $0x3e8] sm:$0xff] %v1292
    %1646 = vst [vmem:[#allocation3 + $0x3f0] sm:$0xff] %v1405
    %1647 = vst [vmem:[#allocation3 + $0x3f8] sm:$0xff] %v1518
    // Predicated region
    $region22: #{svdpp_forward.1} parent=1 // pred_check
      _
    $region23: #{svdpp_forward.1} parent=1 // pred_check_branch
      %1649 = sbr.rel (0) target = $region25
    $region24: #{svdpp_forward.1} parent=1 // pred_region
      %1651 = vsyncadd [#allocation4], 0
      %s1652 = sshll.u32 [#allocation3], 4
      %s1653 = int_to_ptr.vmem [resolvable:$true] %s1652
      %s1654 = sshll.u32 %s4, 4
      %s1655 = int_to_ptr.hbm [resolvable:$true] %s1654
      %1660 = dma.vmem_to_hbm [thread:$0]  %s1653, 16384, %s1655, [#allocation4], 512, 512, 32
    $region25: #{svdpp_forward.1} parent=1 // pred_fallthru
      _
    // Predicated region
    $region26: #{svdpp_forward.1} parent=1 // pred_check
      _
    $region27: #{svdpp_forward.1} parent=1 // pred_check_branch
      %1662 = sbr.rel (0) target = $region29
    $region28: #{svdpp_forward.1} parent=1 // pred_region
      %1664 = dma.done [#allocation4], 16384
    $region29: #{svdpp_forward.1} parent=1 // pred_fallthru
      _
    %1665 = vsyncpa [#allocation4], 1

</llo_original>
